<compile_context>
chip_gen: v7x
topology: tpu7x:2x2x1
jax: 0.10.0
libtpu: 0.0.40
codegen_flags: <defaults>
</compile_context>

<pallas_src>
import functools

import jax
import jax.numpy as jnp
import numpy as np
from jax import lax
from jax.experimental import pallas as pl
from jax.experimental.pallas import tpu as pltpu

VOCAB = 30      # stand-in for len(STOI)
EMB = 5         # embedding dim / LSTM input size
HID = 5         # LSTM hidden size
H1, H2, H3 = 10, 64, 1   # MLP head sizes


def _tree_sum(terms):
    """Pairwise tree add: log-depth instead of a serial accumulate chain."""
    terms = list(terms)
    while len(terms) > 1:
        nxt = [terms[i] + terms[i + 1] for i in range(0, len(terms) - 1, 2)]
        if len(terms) % 2:
            nxt.append(terms[-1])
        terms = nxt
    return terms[0]


def lstm_mlp_kernel(x_ref,            # (B, T) int32 token ids, SMEM
                    gate_tab_ref,     # (VOCAB, 4, HID) f32: C@W_ih + b_ih + b_hh (gate-major)
                    whh_ref,          # (HID, 4, HID) f32: W_hh as (in_k, gate, out)
                    w1_ref, b1_ref,   # (HID, H1), (1, H1)
                    w2_ref, b2_ref,   # (H1, H2),  (1, H2)
                    w3t_ref, b3_ref,  # (1, H2),   (1, H3)   (W3 pre-transposed)
                    pred_ref,         # out: (B, H3)
                    hout_ref,         # out: (B, HID)
                    *, T, B):
    hid = gate_tab_ref.shape[2]

    # Hoist loop-invariant broadcasts out of the recurrence
    # (JAX does not CSE broadcast_in_dim inside loops).
    whh = whh_ref[...]                                               # (HID, 4, HID)
    whh_rows = [jnp.broadcast_to(whh[k][:, None, :], (4, B, hid))
                for k in range(hid)]                                 # HID x (4, B, HID)
    bidx = lax.broadcasted_iota(jnp.int32, (4, B, hid), dimension=1)
    bmask = [bidx == b for b in range(B)]

    # ---- Embedding gather, fused in-kernel ---------------------------------
    # gate_tab already holds C @ W_ih + b (precomputed once at param prep); per
    # token we pull its (4, HID) gate slab with a dynamic leading-axis read.
    # These gathers depend only on X, so they sit OFF the serial h/c chain and
    # the scheduler can overlap them with the recurrence.
    def step_inputs(t):
        acc = jnp.broadcast_to(gate_tab_ref[x_ref[0, t]][:, None, :], (4, B, hid))
        for b in range(1, B):
            slab = jnp.broadcast_to(gate_tab_ref[x_ref[b, t]][:, None, :], (4, B, hid))
            acc = jnp.where(bmask[b], slab, acc)
        return acc                                                   # (4, B, HID)

    gx = [step_inputs(t) for t in range(T)]

    # ---- LSTM recurrence: fully unrolled, VPU/EUP only ----------------------
    h = jnp.zeros((B, hid), jnp.float32)
    c = jnp.zeros((B, hid), jnp.float32)
    for t in range(T):
        # h @ W_hh as HID independent broadcast-FMAs, combined (with gx[t]) via
        # a tree add -> dependency depth from h is 1 mul + ~3 adds per step.
        prods = [jnp.broadcast_to(h[:, k:k + 1][None], (4, B, hid)) * whh_rows[k]
                 for k in range(hid)]
        gates = _tree_sum(prods + [gx[t]])                           # (4, B, HID)
        i_g = jax.nn.sigmoid(gates[0])
        f_g = jax.nn.sigmoid(gates[1])
        g_g = jnp.tanh(gates[2])
        o_g = jax.nn.sigmoid(gates[3])
        c = f_g * c + i_g * g_g
        h = o_g * jnp.tanh(c)

    # ---- MLP head (pure tail latency) ---------------------------------------
    # (B,HID)@(HID,10): VPU broadcast-FMAs (MXU push+drain not worth 2 rows).
    z1_terms = [h[:, k:k + 1] * w1_ref[k:k + 1, :] for k in range(hid)]
    z1 = jnp.tanh(_tree_sum(z1_terms) + b1_ref[...])
    # (B,10)@(10,64): the only matmul worth the MXU.
    z2 = jnp.tanh(jnp.dot(z1, w2_ref[...], preferred_element_type=jnp.float32)
                  + b2_ref[...])
    # (B,64)@(64,1): elementwise mul + lane reduction (XLU) instead of an N=1 matmul.
    z3 = jnp.sum(z2 * w3t_ref[...], axis=-1, keepdims=True) + b3_ref[...]

    # TODO(synk): if B grows, store lane-dense (HID,B)/(1,B) outputs and add a
    # parallel batch grid axis (2 TCs on v7x); at B=2 the masked stores are noise.
    pred_ref[...] = z3
    hout_ref[...] = h


def prepare_kernel_params(params):
    """ONE-TIME, parameter-only preprocessing (do NOT recompute per call):
    fuse embedding + input projection + both biases into a token-indexed
    (VOCAB, 4, HID) gate table and pre-shape the remaining weights."""
    vocab = params["C"].shape[0]
    gate_tab = (params["C"] @ params["W_ih"] + params["b"]).reshape(vocab, 4, HID)
    return dict(
        gate_tab=jnp.asarray(gate_tab, jnp.float32),
        whh=params["W_hh"].reshape(HID, 4, HID),
        W1=params["W1"], b1=params["b1"],
        W2=params["W2"], b2=params["b2"],
        W3T=params["W3"].T, b3=params["b3"],
    )


def constraint_threshold_forward(X, kp):
    """X: (B, T) int32 token ids. kp: prepare_kernel_params(...) output.
    Returns (pred (B,1), h_n[-1] (B,HID))."""
    B, T = X.shape
    smem = pl.BlockSpec(memory_space=pltpu.MemorySpace.SMEM)
    vmem = pl.BlockSpec(memory_space=pltpu.MemorySpace.VMEM)
    pred, h_last = pl.pallas_call(
        functools.partial(lstm_mlp_kernel, T=T, B=B),
        out_shape=(jax.ShapeDtypeStruct((B, H3), jnp.float32),
                   jax.ShapeDtypeStruct((B, HID), jnp.float32)),
        in_specs=[smem] + [vmem] * 8,
        out_specs=(vmem, vmem),
    )(X, kp["gate_tab"], kp["whh"],
      kp["W1"], kp["b1"], kp["W2"], kp["b2"], kp["W3T"], kp["b3"])
    return pred, h_last


def init_params(key):
    ks = jax.random.split(key, 10)
    u = lambda k, shape, s: jax.random.uniform(k, shape, jnp.float32, -s, s)
    # Embedding ~ N(0,1) like nn.Embedding default
    C = jax.random.normal(ks[0], (VOCAB, EMB), jnp.float32)
    s_lstm = 1.0 / np.sqrt(HID)
    W_ih = u(ks[1], (EMB, 4 * HID), s_lstm)          # (in, 4*hid), gate order i,f,g,o
    W_hh = u(ks[2], (HID, 4 * HID), s_lstm)
    b = u(ks[3], (1, 4 * HID), s_lstm) + u(ks[4], (1, 4 * HID), s_lstm)  # b_ih + b_hh
    W1 = u(ks[5], (HID, H1), 1.0 / np.sqrt(HID))
    b1 = u(ks[6], (1, H1), 1.0 / np.sqrt(HID))
    W2 = u(ks[7], (H1, H2), 1.0 / np.sqrt(H1))
    b2 = u(ks[8], (1, H2), 1.0 / np.sqrt(H1))
    W3 = u(ks[9], (H2, H3), 1.0 / np.sqrt(H2))
    b3 = jnp.zeros((1, H3), jnp.float32)
    return dict(C=C, W_ih=W_ih, W_hh=W_hh, b=b,
                W1=W1, b1=b1, W2=W2, b2=b2, W3=W3, b3=b3)


def reference_forward(X, params):
    """Pure-JAX reference with identical semantics (for correctness check)."""
    emb = jnp.take(params["C"], X, axis=0)
    emb = jnp.transpose(emb, (1, 0, 2))              # (T, B, EMB)
    B = X.shape[0]

    def step(carry, x_t):
        h, c = carry
        gates = x_t @ params["W_ih"] + h @ params["W_hh"] + params["b"]
        i_g = jax.nn.sigmoid(gates[:, 0 * HID:1 * HID])
        f_g = jax.nn.sigmoid(gates[:, 1 * HID:2 * HID])
        g_g = jnp.tanh(gates[:, 2 * HID:3 * HID])
        o_g = jax.nn.sigmoid(gates[:, 3 * HID:4 * HID])
        c_n = f_g * c + i_g * g_g
        h_n = o_g * jnp.tanh(c_n)
        return (h_n, c_n), None

    h0 = jnp.zeros((B, HID), jnp.float32)
    (h_last, _), _ = lax.scan(step, (h0, h0), emb)
    z1 = jnp.tanh(h_last @ params["W1"] + params["b1"])
    z2 = jnp.tanh(z1 @ params["W2"] + params["b2"])
    pred = z2 @ params["W3"] + params["b3"]
    return pred, h_last


if __name__ == "__main__":
    key = jax.random.PRNGKey(0)
    pkey, xkey = jax.random.split(key)
    params = init_params(pkey)
    kparams = prepare_kernel_params(params)   # one-time, parameter-only prep

    B, T = 2, 8
    X = jax.random.randint(xkey, (B, T), 0, VOCAB, dtype=jnp.int32)

    fwd = jax.jit(constraint_threshold_forward)
    pred, h_last = fwd(X, kparams)
    pred = jax.block_until_ready(pred)
    h_last = jax.block_until_ready(h_last)

    pred_ref, h_ref = reference_forward(X, params)
    assert pred.shape == (B, 1) and h_last.shape == (B, HID)
    np.testing.assert_allclose(np.asarray(pred), np.asarray(pred_ref),
                               rtol=1e-5, atol=1e-5)
    np.testing.assert_allclose(np.asarray(h_last), np.asarray(h_ref),
                               rtol=1e-5, atol=1e-5)
    print("KERNEL_OK")
</pallas_src>

<mosaic_0001>
module attributes {stable_mosaic.version = 11 : i64} {
  func.func @lstm_mlp_kernel(%arg0: memref<2x8xi32, #tpu.memory_space<smem>>, %arg1: memref<30x4x5xf32, #tpu.memory_space<vmem>>, %arg2: memref<5x4x5xf32, #tpu.memory_space<vmem>>, %arg3: memref<5x10xf32, #tpu.memory_space<vmem>>, %arg4: memref<1x10xf32, #tpu.memory_space<vmem>>, %arg5: memref<10x64xf32, #tpu.memory_space<vmem>>, %arg6: memref<1x64xf32, #tpu.memory_space<vmem>>, %arg7: memref<1x64xf32, #tpu.memory_space<vmem>>, %arg8: memref<1x1xf32, #tpu.memory_space<vmem>>, %arg9: memref<2x1xf32, #tpu.memory_space<vmem>>, %arg10: memref<2x5xf32, #tpu.memory_space<vmem>>) attributes {dimension_semantics = [], scalar_prefetch = 0 : i64, scratch_operands = 0 : i64, tpu.core_type = #tpu.core_type<tc>} {
    %c0 = arith.constant 0 : index
    %c0_0 = arith.constant 0 : index
    %c0_1 = arith.constant 0 : index
    %0 = vector.load %arg2[%c0, %c0_0, %c0_1] : memref<5x4x5xf32, #tpu.memory_space<vmem>>, vector<5x4x5xf32>
    %1 = vector.extract_strided_slice %0 {offsets = [0, 0, 0], sizes = [1, 4, 5], strides = [1, 1, 1]} : vector<5x4x5xf32> to vector<1x4x5xf32>
    %2 = vector.shape_cast %1 : vector<1x4x5xf32> to vector<4x5xf32>
    %3 = vector.shape_cast %2 : vector<4x5xf32> to vector<4x1x5xf32>
    %4 = vector.shape_cast %3 : vector<4x1x5xf32> to vector<4x1x5xf32>
    %5 = vector.broadcast %4 : vector<4x1x5xf32> to vector<4x2x5xf32>
    %6 = vector.extract_strided_slice %0 {offsets = [1, 0, 0], sizes = [1, 4, 5], strides = [1, 1, 1]} : vector<5x4x5xf32> to vector<1x4x5xf32>
    %7 = vector.shape_cast %6 : vector<1x4x5xf32> to vector<4x5xf32>
    %8 = vector.shape_cast %7 : vector<4x5xf32> to vector<4x1x5xf32>
    %9 = vector.shape_cast %8 : vector<4x1x5xf32> to vector<4x1x5xf32>
    %10 = vector.broadcast %9 : vector<4x1x5xf32> to vector<4x2x5xf32>
    %11 = vector.extract_strided_slice %0 {offsets = [2, 0, 0], sizes = [1, 4, 5], strides = [1, 1, 1]} : vector<5x4x5xf32> to vector<1x4x5xf32>
    %12 = vector.shape_cast %11 : vector<1x4x5xf32> to vector<4x5xf32>
    %13 = vector.shape_cast %12 : vector<4x5xf32> to vector<4x1x5xf32>
    %14 = vector.shape_cast %13 : vector<4x1x5xf32> to vector<4x1x5xf32>
    %15 = vector.broadcast %14 : vector<4x1x5xf32> to vector<4x2x5xf32>
    %16 = vector.extract_strided_slice %0 {offsets = [3, 0, 0], sizes = [1, 4, 5], strides = [1, 1, 1]} : vector<5x4x5xf32> to vector<1x4x5xf32>
    %17 = vector.shape_cast %16 : vector<1x4x5xf32> to vector<4x5xf32>
    %18 = vector.shape_cast %17 : vector<4x5xf32> to vector<4x1x5xf32>
    %19 = vector.shape_cast %18 : vector<4x1x5xf32> to vector<4x1x5xf32>
    %20 = vector.broadcast %19 : vector<4x1x5xf32> to vector<4x2x5xf32>
    %21 = vector.extract_strided_slice %0 {offsets = [4, 0, 0], sizes = [1, 4, 5], strides = [1, 1, 1]} : vector<5x4x5xf32> to vector<1x4x5xf32>
    %22 = vector.shape_cast %21 : vector<1x4x5xf32> to vector<4x5xf32>
    %23 = vector.shape_cast %22 : vector<4x5xf32> to vector<4x1x5xf32>
    %24 = vector.shape_cast %23 : vector<4x1x5xf32> to vector<4x1x5xf32>
    %25 = vector.broadcast %24 : vector<4x1x5xf32> to vector<4x2x5xf32>
    %26 = tpu.iota {dimensions = array<i32: 1>} : vector<4x2x5xi32>
    %c1_i32 = arith.constant 1 : i32
    %27 = vector.broadcast %c1_i32 : i32 to vector<4x2x5xi32>
    %28 = arith.cmpi eq, %26, %27 : vector<4x2x5xi32>
    %c0_2 = arith.constant 0 : index
    %c0_3 = arith.constant 0 : index
    %29 = memref.load %arg0[%c0_2, %c0_3] : memref<2x8xi32, #tpu.memory_space<smem>>
    %30 = arith.index_cast %29 : i32 to index
    %c0_4 = arith.constant 0 : index
    %c0_5 = arith.constant 0 : index
    %31 = vector.load %arg1[%30, %c0_4, %c0_5] : memref<30x4x5xf32, #tpu.memory_space<vmem>>, vector<1x4x5xf32>
    %32 = vector.shape_cast %31 : vector<1x4x5xf32> to vector<4x5xf32>
    %33 = vector.shape_cast %32 : vector<4x5xf32> to vector<4x1x5xf32>
    %34 = vector.shape_cast %33 : vector<4x1x5xf32> to vector<4x1x5xf32>
    %35 = vector.broadcast %34 : vector<4x1x5xf32> to vector<4x2x5xf32>
    %c1 = arith.constant 1 : index
    %c0_6 = arith.constant 0 : index
    %36 = memref.load %arg0[%c1, %c0_6] : memref<2x8xi32, #tpu.memory_space<smem>>
    %37 = arith.index_cast %36 : i32 to index
    %c0_7 = arith.constant 0 : index
    %c0_8 = arith.constant 0 : index
    %38 = vector.load %arg1[%37, %c0_7, %c0_8] : memref<30x4x5xf32, #tpu.memory_space<vmem>>, vector<1x4x5xf32>
    %39 = vector.shape_cast %38 : vector<1x4x5xf32> to vector<4x5xf32>
    %40 = vector.shape_cast %39 : vector<4x5xf32> to vector<4x1x5xf32>
    %41 = vector.shape_cast %40 : vector<4x1x5xf32> to vector<4x1x5xf32>
    %42 = vector.broadcast %41 : vector<4x1x5xf32> to vector<4x2x5xf32>
    %43 = arith.select %28, %42, %35 : vector<4x2x5xi1>, vector<4x2x5xf32>
    %c0_9 = arith.constant 0 : index
    %c1_10 = arith.constant 1 : index
    %44 = memref.load %arg0[%c0_9, %c1_10] : memref<2x8xi32, #tpu.memory_space<smem>>
    %45 = arith.index_cast %44 : i32 to index
    %c0_11 = arith.constant 0 : index
    %c0_12 = arith.constant 0 : index
    %46 = vector.load %arg1[%45, %c0_11, %c0_12] : memref<30x4x5xf32, #tpu.memory_space<vmem>>, vector<1x4x5xf32>
    %47 = vector.shape_cast %46 : vector<1x4x5xf32> to vector<4x5xf32>
    %48 = vector.shape_cast %47 : vector<4x5xf32> to vector<4x1x5xf32>
    %49 = vector.shape_cast %48 : vector<4x1x5xf32> to vector<4x1x5xf32>
    %50 = vector.broadcast %49 : vector<4x1x5xf32> to vector<4x2x5xf32>
    %c1_13 = arith.constant 1 : index
    %c1_14 = arith.constant 1 : index
    %51 = memref.load %arg0[%c1_13, %c1_14] : memref<2x8xi32, #tpu.memory_space<smem>>
    %52 = arith.index_cast %51 : i32 to index
    %c0_15 = arith.constant 0 : index
    %c0_16 = arith.constant 0 : index
    %53 = vector.load %arg1[%52, %c0_15, %c0_16] : memref<30x4x5xf32, #tpu.memory_space<vmem>>, vector<1x4x5xf32>
    %54 = vector.shape_cast %53 : vector<1x4x5xf32> to vector<4x5xf32>
    %55 = vector.shape_cast %54 : vector<4x5xf32> to vector<4x1x5xf32>
    %56 = vector.shape_cast %55 : vector<4x1x5xf32> to vector<4x1x5xf32>
    %57 = vector.broadcast %56 : vector<4x1x5xf32> to vector<4x2x5xf32>
    %58 = arith.select %28, %57, %50 : vector<4x2x5xi1>, vector<4x2x5xf32>
    %c0_17 = arith.constant 0 : index
    %c2 = arith.constant 2 : index
    %59 = memref.load %arg0[%c0_17, %c2] : memref<2x8xi32, #tpu.memory_space<smem>>
    %60 = arith.index_cast %59 : i32 to index
    %c0_18 = arith.constant 0 : index
    %c0_19 = arith.constant 0 : index
    %61 = vector.load %arg1[%60, %c0_18, %c0_19] : memref<30x4x5xf32, #tpu.memory_space<vmem>>, vector<1x4x5xf32>
    %62 = vector.shape_cast %61 : vector<1x4x5xf32> to vector<4x5xf32>
    %63 = vector.shape_cast %62 : vector<4x5xf32> to vector<4x1x5xf32>
    %64 = vector.shape_cast %63 : vector<4x1x5xf32> to vector<4x1x5xf32>
    %65 = vector.broadcast %64 : vector<4x1x5xf32> to vector<4x2x5xf32>
    %c1_20 = arith.constant 1 : index
    %c2_21 = arith.constant 2 : index
    %66 = memref.load %arg0[%c1_20, %c2_21] : memref<2x8xi32, #tpu.memory_space<smem>>
    %67 = arith.index_cast %66 : i32 to index
    %c0_22 = arith.constant 0 : index
    %c0_23 = arith.constant 0 : index
    %68 = vector.load %arg1[%67, %c0_22, %c0_23] : memref<30x4x5xf32, #tpu.memory_space<vmem>>, vector<1x4x5xf32>
    %69 = vector.shape_cast %68 : vector<1x4x5xf32> to vector<4x5xf32>
    %70 = vector.shape_cast %69 : vector<4x5xf32> to vector<4x1x5xf32>
    %71 = vector.shape_cast %70 : vector<4x1x5xf32> to vector<4x1x5xf32>
    %72 = vector.broadcast %71 : vector<4x1x5xf32> to vector<4x2x5xf32>
    %73 = arith.select %28, %72, %65 : vector<4x2x5xi1>, vector<4x2x5xf32>
    %c0_24 = arith.constant 0 : index
    %c3 = arith.constant 3 : index
    %74 = memref.load %arg0[%c0_24, %c3] : memref<2x8xi32, #tpu.memory_space<smem>>
    %75 = arith.index_cast %74 : i32 to index
    %c0_25 = arith.constant 0 : index
    %c0_26 = arith.constant 0 : index
    %76 = vector.load %arg1[%75, %c0_25, %c0_26] : memref<30x4x5xf32, #tpu.memory_space<vmem>>, vector<1x4x5xf32>
    %77 = vector.shape_cast %76 : vector<1x4x5xf32> to vector<4x5xf32>
    %78 = vector.shape_cast %77 : vector<4x5xf32> to vector<4x1x5xf32>
    %79 = vector.shape_cast %78 : vector<4x1x5xf32> to vector<4x1x5xf32>
    %80 = vector.broadcast %79 : vector<4x1x5xf32> to vector<4x2x5xf32>
    %c1_27 = arith.constant 1 : index
    %c3_28 = arith.constant 3 : index
    %81 = memref.load %arg0[%c1_27, %c3_28] : memref<2x8xi32, #tpu.memory_space<smem>>
    %82 = arith.index_cast %81 : i32 to index
    %c0_29 = arith.constant 0 : index
    %c0_30 = arith.constant 0 : index
    %83 = vector.load %arg1[%82, %c0_29, %c0_30] : memref<30x4x5xf32, #tpu.memory_space<vmem>>, vector<1x4x5xf32>
    %84 = vector.shape_cast %83 : vector<1x4x5xf32> to vector<4x5xf32>
    %85 = vector.shape_cast %84 : vector<4x5xf32> to vector<4x1x5xf32>
    %86 = vector.shape_cast %85 : vector<4x1x5xf32> to vector<4x1x5xf32>
    %87 = vector.broadcast %86 : vector<4x1x5xf32> to vector<4x2x5xf32>
    %88 = arith.select %28, %87, %80 : vector<4x2x5xi1>, vector<4x2x5xf32>
    %c0_31 = arith.constant 0 : index
    %c4 = arith.constant 4 : index
    %89 = memref.load %arg0[%c0_31, %c4] : memref<2x8xi32, #tpu.memory_space<smem>>
    %90 = arith.index_cast %89 : i32 to index
    %c0_32 = arith.constant 0 : index
    %c0_33 = arith.constant 0 : index
    %91 = vector.load %arg1[%90, %c0_32, %c0_33] : memref<30x4x5xf32, #tpu.memory_space<vmem>>, vector<1x4x5xf32>
    %92 = vector.shape_cast %91 : vector<1x4x5xf32> to vector<4x5xf32>
    %93 = vector.shape_cast %92 : vector<4x5xf32> to vector<4x1x5xf32>
    %94 = vector.shape_cast %93 : vector<4x1x5xf32> to vector<4x1x5xf32>
    %95 = vector.broadcast %94 : vector<4x1x5xf32> to vector<4x2x5xf32>
    %c1_34 = arith.constant 1 : index
    %c4_35 = arith.constant 4 : index
    %96 = memref.load %arg0[%c1_34, %c4_35] : memref<2x8xi32, #tpu.memory_space<smem>>
    %97 = arith.index_cast %96 : i32 to index
    %c0_36 = arith.constant 0 : index
    %c0_37 = arith.constant 0 : index
    %98 = vector.load %arg1[%97, %c0_36, %c0_37] : memref<30x4x5xf32, #tpu.memory_space<vmem>>, vector<1x4x5xf32>
    %99 = vector.shape_cast %98 : vector<1x4x5xf32> to vector<4x5xf32>
    %100 = vector.shape_cast %99 : vector<4x5xf32> to vector<4x1x5xf32>
    %101 = vector.shape_cast %100 : vector<4x1x5xf32> to vector<4x1x5xf32>
    %102 = vector.broadcast %101 : vector<4x1x5xf32> to vector<4x2x5xf32>
    %103 = arith.select %28, %102, %95 : vector<4x2x5xi1>, vector<4x2x5xf32>
    %c0_38 = arith.constant 0 : index
    %c5 = arith.constant 5 : index
    %104 = memref.load %arg0[%c0_38, %c5] : memref<2x8xi32, #tpu.memory_space<smem>>
    %105 = arith.index_cast %104 : i32 to index
    %c0_39 = arith.constant 0 : index
    %c0_40 = arith.constant 0 : index
    %106 = vector.load %arg1[%105, %c0_39, %c0_40] : memref<30x4x5xf32, #tpu.memory_space<vmem>>, vector<1x4x5xf32>
    %107 = vector.shape_cast %106 : vector<1x4x5xf32> to vector<4x5xf32>
    %108 = vector.shape_cast %107 : vector<4x5xf32> to vector<4x1x5xf32>
    %109 = vector.shape_cast %108 : vector<4x1x5xf32> to vector<4x1x5xf32>
    %110 = vector.broadcast %109 : vector<4x1x5xf32> to vector<4x2x5xf32>
    %c1_41 = arith.constant 1 : index
    %c5_42 = arith.constant 5 : index
    %111 = memref.load %arg0[%c1_41, %c5_42] : memref<2x8xi32, #tpu.memory_space<smem>>
    %112 = arith.index_cast %111 : i32 to index
    %c0_43 = arith.constant 0 : index
    %c0_44 = arith.constant 0 : index
    %113 = vector.load %arg1[%112, %c0_43, %c0_44] : memref<30x4x5xf32, #tpu.memory_space<vmem>>, vector<1x4x5xf32>
    %114 = vector.shape_cast %113 : vector<1x4x5xf32> to vector<4x5xf32>
    %115 = vector.shape_cast %114 : vector<4x5xf32> to vector<4x1x5xf32>
    %116 = vector.shape_cast %115 : vector<4x1x5xf32> to vector<4x1x5xf32>
    %117 = vector.broadcast %116 : vector<4x1x5xf32> to vector<4x2x5xf32>
    %118 = arith.select %28, %117, %110 : vector<4x2x5xi1>, vector<4x2x5xf32>
    %c0_45 = arith.constant 0 : index
    %c6 = arith.constant 6 : index
    %119 = memref.load %arg0[%c0_45, %c6] : memref<2x8xi32, #tpu.memory_space<smem>>
    %120 = arith.index_cast %119 : i32 to index
    %c0_46 = arith.constant 0 : index
    %c0_47 = arith.constant 0 : index
    %121 = vector.load %arg1[%120, %c0_46, %c0_47] : memref<30x4x5xf32, #tpu.memory_space<vmem>>, vector<1x4x5xf32>
    %122 = vector.shape_cast %121 : vector<1x4x5xf32> to vector<4x5xf32>
    %123 = vector.shape_cast %122 : vector<4x5xf32> to vector<4x1x5xf32>
    %124 = vector.shape_cast %123 : vector<4x1x5xf32> to vector<4x1x5xf32>
    %125 = vector.broadcast %124 : vector<4x1x5xf32> to vector<4x2x5xf32>
    %c1_48 = arith.constant 1 : index
    %c6_49 = arith.constant 6 : index
    %126 = memref.load %arg0[%c1_48, %c6_49] : memref<2x8xi32, #tpu.memory_space<smem>>
    %127 = arith.index_cast %126 : i32 to index
    %c0_50 = arith.constant 0 : index
    %c0_51 = arith.constant 0 : index
    %128 = vector.load %arg1[%127, %c0_50, %c0_51] : memref<30x4x5xf32, #tpu.memory_space<vmem>>, vector<1x4x5xf32>
    %129 = vector.shape_cast %128 : vector<1x4x5xf32> to vector<4x5xf32>
    %130 = vector.shape_cast %129 : vector<4x5xf32> to vector<4x1x5xf32>
    %131 = vector.shape_cast %130 : vector<4x1x5xf32> to vector<4x1x5xf32>
    %132 = vector.broadcast %131 : vector<4x1x5xf32> to vector<4x2x5xf32>
    %133 = arith.select %28, %132, %125 : vector<4x2x5xi1>, vector<4x2x5xf32>
    %c0_52 = arith.constant 0 : index
    %c7 = arith.constant 7 : index
    %134 = memref.load %arg0[%c0_52, %c7] : memref<2x8xi32, #tpu.memory_space<smem>>
    %135 = arith.index_cast %134 : i32 to index
    %c0_53 = arith.constant 0 : index
    %c0_54 = arith.constant 0 : index
    %136 = vector.load %arg1[%135, %c0_53, %c0_54] : memref<30x4x5xf32, #tpu.memory_space<vmem>>, vector<1x4x5xf32>
    %137 = vector.shape_cast %136 : vector<1x4x5xf32> to vector<4x5xf32>
    %138 = vector.shape_cast %137 : vector<4x5xf32> to vector<4x1x5xf32>
    %139 = vector.shape_cast %138 : vector<4x1x5xf32> to vector<4x1x5xf32>
    %140 = vector.broadcast %139 : vector<4x1x5xf32> to vector<4x2x5xf32>
    %c1_55 = arith.constant 1 : index
    %c7_56 = arith.constant 7 : index
    %141 = memref.load %arg0[%c1_55, %c7_56] : memref<2x8xi32, #tpu.memory_space<smem>>
    %142 = arith.index_cast %141 : i32 to index
    %c0_57 = arith.constant 0 : index
    %c0_58 = arith.constant 0 : index
    %143 = vector.load %arg1[%142, %c0_57, %c0_58] : memref<30x4x5xf32, #tpu.memory_space<vmem>>, vector<1x4x5xf32>
    %144 = vector.shape_cast %143 : vector<1x4x5xf32> to vector<4x5xf32>
    %145 = vector.shape_cast %144 : vector<4x5xf32> to vector<4x1x5xf32>
    %146 = vector.shape_cast %145 : vector<4x1x5xf32> to vector<4x1x5xf32>
    %147 = vector.broadcast %146 : vector<4x1x5xf32> to vector<4x2x5xf32>
    %148 = arith.select %28, %147, %140 : vector<4x2x5xi1>, vector<4x2x5xf32>
    %cst = arith.constant 0.000000e+00 : f32
    %149 = vector.broadcast %cst : f32 to vector<2x5xf32>
    %cst_59 = arith.constant 0.000000e+00 : f32
    %150 = vector.broadcast %cst_59 : f32 to vector<2x5xf32>
    %151 = vector.extract_strided_slice %149 {offsets = [0, 0], sizes = [2, 1], strides = [1, 1]} : vector<2x5xf32> to vector<2x1xf32>
    %152 = vector.shape_cast %151 : vector<2x1xf32> to vector<1x2x1xf32>
    %153 = vector.shape_cast %152 : vector<1x2x1xf32> to vector<1x2x1xf32>
    %154 = vector.broadcast %153 : vector<1x2x1xf32> to vector<4x2x5xf32>
    %155 = arith.mulf %154, %5 : vector<4x2x5xf32>
    %156 = vector.extract_strided_slice %149 {offsets = [0, 1], sizes = [2, 1], strides = [1, 1]} : vector<2x5xf32> to vector<2x1xf32>
    %157 = vector.shape_cast %156 : vector<2x1xf32> to vector<1x2x1xf32>
    %158 = vector.shape_cast %157 : vector<1x2x1xf32> to vector<1x2x1xf32>
    %159 = vector.broadcast %158 : vector<1x2x1xf32> to vector<4x2x5xf32>
    %160 = arith.mulf %159, %10 : vector<4x2x5xf32>
    %161 = vector.extract_strided_slice %149 {offsets = [0, 2], sizes = [2, 1], strides = [1, 1]} : vector<2x5xf32> to vector<2x1xf32>
    %162 = vector.shape_cast %161 : vector<2x1xf32> to vector<1x2x1xf32>
    %163 = vector.shape_cast %162 : vector<1x2x1xf32> to vector<1x2x1xf32>
    %164 = vector.broadcast %163 : vector<1x2x1xf32> to vector<4x2x5xf32>
    %165 = arith.mulf %164, %15 : vector<4x2x5xf32>
    %166 = vector.extract_strided_slice %149 {offsets = [0, 3], sizes = [2, 1], strides = [1, 1]} : vector<2x5xf32> to vector<2x1xf32>
    %167 = vector.shape_cast %166 : vector<2x1xf32> to vector<1x2x1xf32>
    %168 = vector.shape_cast %167 : vector<1x2x1xf32> to vector<1x2x1xf32>
    %169 = vector.broadcast %168 : vector<1x2x1xf32> to vector<4x2x5xf32>
    %170 = arith.mulf %169, %20 : vector<4x2x5xf32>
    %171 = vector.extract_strided_slice %149 {offsets = [0, 4], sizes = [2, 1], strides = [1, 1]} : vector<2x5xf32> to vector<2x1xf32>
    %172 = vector.shape_cast %171 : vector<2x1xf32> to vector<1x2x1xf32>
    %173 = vector.shape_cast %172 : vector<1x2x1xf32> to vector<1x2x1xf32>
    %174 = vector.broadcast %173 : vector<1x2x1xf32> to vector<4x2x5xf32>
    %175 = arith.mulf %174, %25 : vector<4x2x5xf32>
    %176 = arith.addf %155, %160 : vector<4x2x5xf32>
    %177 = arith.addf %165, %170 : vector<4x2x5xf32>
    %178 = arith.addf %175, %43 : vector<4x2x5xf32>
    %179 = arith.addf %176, %177 : vector<4x2x5xf32>
    %180 = arith.addf %179, %178 : vector<4x2x5xf32>
    %181 = vector.extract_strided_slice %180 {offsets = [0, 0, 0], sizes = [1, 2, 5], strides = [1, 1, 1]} : vector<4x2x5xf32> to vector<1x2x5xf32>
    %182 = vector.shape_cast %181 : vector<1x2x5xf32> to vector<2x5xf32>
    %183 = arith.negf %182 : vector<2x5xf32>
    %184 = math.exp %183 : vector<2x5xf32>
    %cst_60 = arith.constant 1.000000e+00 : f32
    %185 = vector.broadcast %cst_60 : f32 to vector<2x5xf32>
    %186 = arith.addf %185, %184 : vector<2x5xf32>
    %187 = arith.divf %185, %186 : vector<2x5xf32>
    %188 = vector.extract_strided_slice %180 {offsets = [1, 0, 0], sizes = [1, 2, 5], strides = [1, 1, 1]} : vector<4x2x5xf32> to vector<1x2x5xf32>
    %189 = vector.shape_cast %188 : vector<1x2x5xf32> to vector<2x5xf32>
    %190 = arith.negf %189 : vector<2x5xf32>
    %191 = math.exp %190 : vector<2x5xf32>
    %cst_61 = arith.constant 1.000000e+00 : f32
    %192 = vector.broadcast %cst_61 : f32 to vector<2x5xf32>
    %193 = arith.addf %192, %191 : vector<2x5xf32>
    %194 = arith.divf %192, %193 : vector<2x5xf32>
    %195 = vector.extract_strided_slice %180 {offsets = [2, 0, 0], sizes = [1, 2, 5], strides = [1, 1, 1]} : vector<4x2x5xf32> to vector<1x2x5xf32>
    %196 = vector.shape_cast %195 : vector<1x2x5xf32> to vector<2x5xf32>
    %197 = math.tanh %196 : vector<2x5xf32>
    %198 = vector.extract_strided_slice %180 {offsets = [3, 0, 0], sizes = [1, 2, 5], strides = [1, 1, 1]} : vector<4x2x5xf32> to vector<1x2x5xf32>
    %199 = vector.shape_cast %198 : vector<1x2x5xf32> to vector<2x5xf32>
    %200 = arith.negf %199 : vector<2x5xf32>
    %201 = math.exp %200 : vector<2x5xf32>
    %cst_62 = arith.constant 1.000000e+00 : f32
    %202 = vector.broadcast %cst_62 : f32 to vector<2x5xf32>
    %203 = arith.addf %202, %201 : vector<2x5xf32>
    %204 = arith.divf %202, %203 : vector<2x5xf32>
    %205 = arith.mulf %194, %150 : vector<2x5xf32>
    %206 = arith.mulf %187, %197 : vector<2x5xf32>
    %207 = arith.addf %205, %206 : vector<2x5xf32>
    %208 = math.tanh %207 : vector<2x5xf32>
    %209 = arith.mulf %204, %208 : vector<2x5xf32>
    %210 = vector.extract_strided_slice %209 {offsets = [0, 0], sizes = [2, 1], strides = [1, 1]} : vector<2x5xf32> to vector<2x1xf32>
    %211 = vector.shape_cast %210 : vector<2x1xf32> to vector<1x2x1xf32>
    %212 = vector.shape_cast %211 : vector<1x2x1xf32> to vector<1x2x1xf32>
    %213 = vector.broadcast %212 : vector<1x2x1xf32> to vector<4x2x5xf32>
    %214 = arith.mulf %213, %5 : vector<4x2x5xf32>
    %215 = vector.extract_strided_slice %209 {offsets = [0, 1], sizes = [2, 1], strides = [1, 1]} : vector<2x5xf32> to vector<2x1xf32>
    %216 = vector.shape_cast %215 : vector<2x1xf32> to vector<1x2x1xf32>
    %217 = vector.shape_cast %216 : vector<1x2x1xf32> to vector<1x2x1xf32>
    %218 = vector.broadcast %217 : vector<1x2x1xf32> to vector<4x2x5xf32>
    %219 = arith.mulf %218, %10 : vector<4x2x5xf32>
    %220 = vector.extract_strided_slice %209 {offsets = [0, 2], sizes = [2, 1], strides = [1, 1]} : vector<2x5xf32> to vector<2x1xf32>
    %221 = vector.shape_cast %220 : vector<2x1xf32> to vector<1x2x1xf32>
    %222 = vector.shape_cast %221 : vector<1x2x1xf32> to vector<1x2x1xf32>
    %223 = vector.broadcast %222 : vector<1x2x1xf32> to vector<4x2x5xf32>
    %224 = arith.mulf %223, %15 : vector<4x2x5xf32>
    %225 = vector.extract_strided_slice %209 {offsets = [0, 3], sizes = [2, 1], strides = [1, 1]} : vector<2x5xf32> to vector<2x1xf32>
    %226 = vector.shape_cast %225 : vector<2x1xf32> to vector<1x2x1xf32>
    %227 = vector.shape_cast %226 : vector<1x2x1xf32> to vector<1x2x1xf32>
    %228 = vector.broadcast %227 : vector<1x2x1xf32> to vector<4x2x5xf32>
    %229 = arith.mulf %228, %20 : vector<4x2x5xf32>
    %230 = vector.extract_strided_slice %209 {offsets = [0, 4], sizes = [2, 1], strides = [1, 1]} : vector<2x5xf32> to vector<2x1xf32>
    %231 = vector.shape_cast %230 : vector<2x1xf32> to vector<1x2x1xf32>
    %232 = vector.shape_cast %231 : vector<1x2x1xf32> to vector<1x2x1xf32>
    %233 = vector.broadcast %232 : vector<1x2x1xf32> to vector<4x2x5xf32>
    %234 = arith.mulf %233, %25 : vector<4x2x5xf32>
    %235 = arith.addf %214, %219 : vector<4x2x5xf32>
    %236 = arith.addf %224, %229 : vector<4x2x5xf32>
    %237 = arith.addf %234, %58 : vector<4x2x5xf32>
    %238 = arith.addf %235, %236 : vector<4x2x5xf32>
    %239 = arith.addf %238, %237 : vector<4x2x5xf32>
    %240 = vector.extract_strided_slice %239 {offsets = [0, 0, 0], sizes = [1, 2, 5], strides = [1, 1, 1]} : vector<4x2x5xf32> to vector<1x2x5xf32>
    %241 = vector.shape_cast %240 : vector<1x2x5xf32> to vector<2x5xf32>
    %242 = arith.negf %241 : vector<2x5xf32>
    %243 = math.exp %242 : vector<2x5xf32>
    %cst_63 = arith.constant 1.000000e+00 : f32
    %244 = vector.broadcast %cst_63 : f32 to vector<2x5xf32>
    %245 = arith.addf %244, %243 : vector<2x5xf32>
    %246 = arith.divf %244, %245 : vector<2x5xf32>
    %247 = vector.extract_strided_slice %239 {offsets = [1, 0, 0], sizes = [1, 2, 5], strides = [1, 1, 1]} : vector<4x2x5xf32> to vector<1x2x5xf32>
    %248 = vector.shape_cast %247 : vector<1x2x5xf32> to vector<2x5xf32>
    %249 = arith.negf %248 : vector<2x5xf32>
    %250 = math.exp %249 : vector<2x5xf32>
    %cst_64 = arith.constant 1.000000e+00 : f32
    %251 = vector.broadcast %cst_64 : f32 to vector<2x5xf32>
    %252 = arith.addf %251, %250 : vector<2x5xf32>
    %253 = arith.divf %251, %252 : vector<2x5xf32>
    %254 = vector.extract_strided_slice %239 {offsets = [2, 0, 0], sizes = [1, 2, 5], strides = [1, 1, 1]} : vector<4x2x5xf32> to vector<1x2x5xf32>
    %255 = vector.shape_cast %254 : vector<1x2x5xf32> to vector<2x5xf32>
    %256 = math.tanh %255 : vector<2x5xf32>
    %257 = vector.extract_strided_slice %239 {offsets = [3, 0, 0], sizes = [1, 2, 5], strides = [1, 1, 1]} : vector<4x2x5xf32> to vector<1x2x5xf32>
    %258 = vector.shape_cast %257 : vector<1x2x5xf32> to vector<2x5xf32>
    %259 = arith.negf %258 : vector<2x5xf32>
    %260 = math.exp %259 : vector<2x5xf32>
    %cst_65 = arith.constant 1.000000e+00 : f32
    %261 = vector.broadcast %cst_65 : f32 to vector<2x5xf32>
    %262 = arith.addf %261, %260 : vector<2x5xf32>
    %263 = arith.divf %261, %262 : vector<2x5xf32>
    %264 = arith.mulf %253, %207 : vector<2x5xf32>
    %265 = arith.mulf %246, %256 : vector<2x5xf32>
    %266 = arith.addf %264, %265 : vector<2x5xf32>
    %267 = math.tanh %266 : vector<2x5xf32>
    %268 = arith.mulf %263, %267 : vector<2x5xf32>
    %269 = vector.extract_strided_slice %268 {offsets = [0, 0], sizes = [2, 1], strides = [1, 1]} : vector<2x5xf32> to vector<2x1xf32>
    %270 = vector.shape_cast %269 : vector<2x1xf32> to vector<1x2x1xf32>
    %271 = vector.shape_cast %270 : vector<1x2x1xf32> to vector<1x2x1xf32>
    %272 = vector.broadcast %271 : vector<1x2x1xf32> to vector<4x2x5xf32>
    %273 = arith.mulf %272, %5 : vector<4x2x5xf32>
    %274 = vector.extract_strided_slice %268 {offsets = [0, 1], sizes = [2, 1], strides = [1, 1]} : vector<2x5xf32> to vector<2x1xf32>
    %275 = vector.shape_cast %274 : vector<2x1xf32> to vector<1x2x1xf32>
    %276 = vector.shape_cast %275 : vector<1x2x1xf32> to vector<1x2x1xf32>
    %277 = vector.broadcast %276 : vector<1x2x1xf32> to vector<4x2x5xf32>
    %278 = arith.mulf %277, %10 : vector<4x2x5xf32>
    %279 = vector.extract_strided_slice %268 {offsets = [0, 2], sizes = [2, 1], strides = [1, 1]} : vector<2x5xf32> to vector<2x1xf32>
    %280 = vector.shape_cast %279 : vector<2x1xf32> to vector<1x2x1xf32>
    %281 = vector.shape_cast %280 : vector<1x2x1xf32> to vector<1x2x1xf32>
    %282 = vector.broadcast %281 : vector<1x2x1xf32> to vector<4x2x5xf32>
    %283 = arith.mulf %282, %15 : vector<4x2x5xf32>
    %284 = vector.extract_strided_slice %268 {offsets = [0, 3], sizes = [2, 1], strides = [1, 1]} : vector<2x5xf32> to vector<2x1xf32>
    %285 = vector.shape_cast %284 : vector<2x1xf32> to vector<1x2x1xf32>
    %286 = vector.shape_cast %285 : vector<1x2x1xf32> to vector<1x2x1xf32>
    %287 = vector.broadcast %286 : vector<1x2x1xf32> to vector<4x2x5xf32>
    %288 = arith.mulf %287, %20 : vector<4x2x5xf32>
    %289 = vector.extract_strided_slice %268 {offsets = [0, 4], sizes = [2, 1], strides = [1, 1]} : vector<2x5xf32> to vector<2x1xf32>
    %290 = vector.shape_cast %289 : vector<2x1xf32> to vector<1x2x1xf32>
    %291 = vector.shape_cast %290 : vector<1x2x1xf32> to vector<1x2x1xf32>
    %292 = vector.broadcast %291 : vector<1x2x1xf32> to vector<4x2x5xf32>
    %293 = arith.mulf %292, %25 : vector<4x2x5xf32>
    %294 = arith.addf %273, %278 : vector<4x2x5xf32>
    %295 = arith.addf %283, %288 : vector<4x2x5xf32>
    %296 = arith.addf %293, %73 : vector<4x2x5xf32>
    %297 = arith.addf %294, %295 : vector<4x2x5xf32>
    %298 = arith.addf %297, %296 : vector<4x2x5xf32>
    %299 = vector.extract_strided_slice %298 {offsets = [0, 0, 0], sizes = [1, 2, 5], strides = [1, 1, 1]} : vector<4x2x5xf32> to vector<1x2x5xf32>
    %300 = vector.shape_cast %299 : vector<1x2x5xf32> to vector<2x5xf32>
    %301 = arith.negf %300 : vector<2x5xf32>
    %302 = math.exp %301 : vector<2x5xf32>
    %cst_66 = arith.constant 1.000000e+00 : f32
    %303 = vector.broadcast %cst_66 : f32 to vector<2x5xf32>
    %304 = arith.addf %303, %302 : vector<2x5xf32>
    %305 = arith.divf %303, %304 : vector<2x5xf32>
    %306 = vector.extract_strided_slice %298 {offsets = [1, 0, 0], sizes = [1, 2, 5], strides = [1, 1, 1]} : vector<4x2x5xf32> to vector<1x2x5xf32>
    %307 = vector.shape_cast %306 : vector<1x2x5xf32> to vector<2x5xf32>
    %308 = arith.negf %307 : vector<2x5xf32>
    %309 = math.exp %308 : vector<2x5xf32>
    %cst_67 = arith.constant 1.000000e+00 : f32
    %310 = vector.broadcast %cst_67 : f32 to vector<2x5xf32>
    %311 = arith.addf %310, %309 : vector<2x5xf32>
    %312 = arith.divf %310, %311 : vector<2x5xf32>
    %313 = vector.extract_strided_slice %298 {offsets = [2, 0, 0], sizes = [1, 2, 5], strides = [1, 1, 1]} : vector<4x2x5xf32> to vector<1x2x5xf32>
    %314 = vector.shape_cast %313 : vector<1x2x5xf32> to vector<2x5xf32>
    %315 = math.tanh %314 : vector<2x5xf32>
    %316 = vector.extract_strided_slice %298 {offsets = [3, 0, 0], sizes = [1, 2, 5], strides = [1, 1, 1]} : vector<4x2x5xf32> to vector<1x2x5xf32>
    %317 = vector.shape_cast %316 : vector<1x2x5xf32> to vector<2x5xf32>
    %318 = arith.negf %317 : vector<2x5xf32>
    %319 = math.exp %318 : vector<2x5xf32>
    %cst_68 = arith.constant 1.000000e+00 : f32
    %320 = vector.broadcast %cst_68 : f32 to vector<2x5xf32>
    %321 = arith.addf %320, %319 : vector<2x5xf32>
    %322 = arith.divf %320, %321 : vector<2x5xf32>
    %323 = arith.mulf %312, %266 : vector<2x5xf32>
    %324 = arith.mulf %305, %315 : vector<2x5xf32>
    %325 = arith.addf %323, %324 : vector<2x5xf32>
    %326 = math.tanh %325 : vector<2x5xf32>
    %327 = arith.mulf %322, %326 : vector<2x5xf32>
    %328 = vector.extract_strided_slice %327 {offsets = [0, 0], sizes = [2, 1], strides = [1, 1]} : vector<2x5xf32> to vector<2x1xf32>
    %329 = vector.shape_cast %328 : vector<2x1xf32> to vector<1x2x1xf32>
    %330 = vector.shape_cast %329 : vector<1x2x1xf32> to vector<1x2x1xf32>
    %331 = vector.broadcast %330 : vector<1x2x1xf32> to vector<4x2x5xf32>
    %332 = arith.mulf %331, %5 : vector<4x2x5xf32>
    %333 = vector.extract_strided_slice %327 {offsets = [0, 1], sizes = [2, 1], strides = [1, 1]} : vector<2x5xf32> to vector<2x1xf32>
    %334 = vector.shape_cast %333 : vector<2x1xf32> to vector<1x2x1xf32>
    %335 = vector.shape_cast %334 : vector<1x2x1xf32> to vector<1x2x1xf32>
    %336 = vector.broadcast %335 : vector<1x2x1xf32> to vector<4x2x5xf32>
    %337 = arith.mulf %336, %10 : vector<4x2x5xf32>
    %338 = vector.extract_strided_slice %327 {offsets = [0, 2], sizes = [2, 1], strides = [1, 1]} : vector<2x5xf32> to vector<2x1xf32>
    %339 = vector.shape_cast %338 : vector<2x1xf32> to vector<1x2x1xf32>
    %340 = vector.shape_cast %339 : vector<1x2x1xf32> to vector<1x2x1xf32>
    %341 = vector.broadcast %340 : vector<1x2x1xf32> to vector<4x2x5xf32>
    %342 = arith.mulf %341, %15 : vector<4x2x5xf32>
    %343 = vector.extract_strided_slice %327 {offsets = [0, 3], sizes = [2, 1], strides = [1, 1]} : vector<2x5xf32> to vector<2x1xf32>
    %344 = vector.shape_cast %343 : vector<2x1xf32> to vector<1x2x1xf32>
    %345 = vector.shape_cast %344 : vector<1x2x1xf32> to vector<1x2x1xf32>
    %346 = vector.broadcast %345 : vector<1x2x1xf32> to vector<4x2x5xf32>
    %347 = arith.mulf %346, %20 : vector<4x2x5xf32>
    %348 = vector.extract_strided_slice %327 {offsets = [0, 4], sizes = [2, 1], strides = [1, 1]} : vector<2x5xf32> to vector<2x1xf32>
    %349 = vector.shape_cast %348 : vector<2x1xf32> to vector<1x2x1xf32>
    %350 = vector.shape_cast %349 : vector<1x2x1xf32> to vector<1x2x1xf32>
    %351 = vector.broadcast %350 : vector<1x2x1xf32> to vector<4x2x5xf32>
    %352 = arith.mulf %351, %25 : vector<4x2x5xf32>
    %353 = arith.addf %332, %337 : vector<4x2x5xf32>
    %354 = arith.addf %342, %347 : vector<4x2x5xf32>
    %355 = arith.addf %352, %88 : vector<4x2x5xf32>
    %356 = arith.addf %353, %354 : vector<4x2x5xf32>
    %357 = arith.addf %356, %355 : vector<4x2x5xf32>
    %358 = vector.extract_strided_slice %357 {offsets = [0, 0, 0], sizes = [1, 2, 5], strides = [1, 1, 1]} : vector<4x2x5xf32> to vector<1x2x5xf32>
    %359 = vector.shape_cast %358 : vector<1x2x5xf32> to vector<2x5xf32>
    %360 = arith.negf %359 : vector<2x5xf32>
    %361 = math.exp %360 : vector<2x5xf32>
    %cst_69 = arith.constant 1.000000e+00 : f32
    %362 = vector.broadcast %cst_69 : f32 to vector<2x5xf32>
    %363 = arith.addf %362, %361 : vector<2x5xf32>
    %364 = arith.divf %362, %363 : vector<2x5xf32>
    %365 = vector.extract_strided_slice %357 {offsets = [1, 0, 0], sizes = [1, 2, 5], strides = [1, 1, 1]} : vector<4x2x5xf32> to vector<1x2x5xf32>
    %366 = vector.shape_cast %365 : vector<1x2x5xf32> to vector<2x5xf32>
    %367 = arith.negf %366 : vector<2x5xf32>
    %368 = math.exp %367 : vector<2x5xf32>
    %cst_70 = arith.constant 1.000000e+00 : f32
    %369 = vector.broadcast %cst_70 : f32 to vector<2x5xf32>
    %370 = arith.addf %369, %368 : vector<2x5xf32>
    %371 = arith.divf %369, %370 : vector<2x5xf32>
    %372 = vector.extract_strided_slice %357 {offsets = [2, 0, 0], sizes = [1, 2, 5], strides = [1, 1, 1]} : vector<4x2x5xf32> to vector<1x2x5xf32>
    %373 = vector.shape_cast %372 : vector<1x2x5xf32> to vector<2x5xf32>
    %374 = math.tanh %373 : vector<2x5xf32>
    %375 = vector.extract_strided_slice %357 {offsets = [3, 0, 0], sizes = [1, 2, 5], strides = [1, 1, 1]} : vector<4x2x5xf32> to vector<1x2x5xf32>
    %376 = vector.shape_cast %375 : vector<1x2x5xf32> to vector<2x5xf32>
    %377 = arith.negf %376 : vector<2x5xf32>
    %378 = math.exp %377 : vector<2x5xf32>
    %cst_71 = arith.constant 1.000000e+00 : f32
    %379 = vector.broadcast %cst_71 : f32 to vector<2x5xf32>
    %380 = arith.addf %379, %378 : vector<2x5xf32>
    %381 = arith.divf %379, %380 : vector<2x5xf32>
    %382 = arith.mulf %371, %325 : vector<2x5xf32>
    %383 = arith.mulf %364, %374 : vector<2x5xf32>
    %384 = arith.addf %382, %383 : vector<2x5xf32>
    %385 = math.tanh %384 : vector<2x5xf32>
    %386 = arith.mulf %381, %385 : vector<2x5xf32>
    %387 = vector.extract_strided_slice %386 {offsets = [0, 0], sizes = [2, 1], strides = [1, 1]} : vector<2x5xf32> to vector<2x1xf32>
    %388 = vector.shape_cast %387 : vector<2x1xf32> to vector<1x2x1xf32>
    %389 = vector.shape_cast %388 : vector<1x2x1xf32> to vector<1x2x1xf32>
    %390 = vector.broadcast %389 : vector<1x2x1xf32> to vector<4x2x5xf32>
    %391 = arith.mulf %390, %5 : vector<4x2x5xf32>
    %392 = vector.extract_strided_slice %386 {offsets = [0, 1], sizes = [2, 1], strides = [1, 1]} : vector<2x5xf32> to vector<2x1xf32>
    %393 = vector.shape_cast %392 : vector<2x1xf32> to vector<1x2x1xf32>
    %394 = vector.shape_cast %393 : vector<1x2x1xf32> to vector<1x2x1xf32>
    %395 = vector.broadcast %394 : vector<1x2x1xf32> to vector<4x2x5xf32>
    %396 = arith.mulf %395, %10 : vector<4x2x5xf32>
    %397 = vector.extract_strided_slice %386 {offsets = [0, 2], sizes = [2, 1], strides = [1, 1]} : vector<2x5xf32> to vector<2x1xf32>
    %398 = vector.shape_cast %397 : vector<2x1xf32> to vector<1x2x1xf32>
    %399 = vector.shape_cast %398 : vector<1x2x1xf32> to vector<1x2x1xf32>
    %400 = vector.broadcast %399 : vector<1x2x1xf32> to vector<4x2x5xf32>
    %401 = arith.mulf %400, %15 : vector<4x2x5xf32>
    %402 = vector.extract_strided_slice %386 {offsets = [0, 3], sizes = [2, 1], strides = [1, 1]} : vector<2x5xf32> to vector<2x1xf32>
    %403 = vector.shape_cast %402 : vector<2x1xf32> to vector<1x2x1xf32>
    %404 = vector.shape_cast %403 : vector<1x2x1xf32> to vector<1x2x1xf32>
    %405 = vector.broadcast %404 : vector<1x2x1xf32> to vector<4x2x5xf32>
    %406 = arith.mulf %405, %20 : vector<4x2x5xf32>
    %407 = vector.extract_strided_slice %386 {offsets = [0, 4], sizes = [2, 1], strides = [1, 1]} : vector<2x5xf32> to vector<2x1xf32>
    %408 = vector.shape_cast %407 : vector<2x1xf32> to vector<1x2x1xf32>
    %409 = vector.shape_cast %408 : vector<1x2x1xf32> to vector<1x2x1xf32>
    %410 = vector.broadcast %409 : vector<1x2x1xf32> to vector<4x2x5xf32>
    %411 = arith.mulf %410, %25 : vector<4x2x5xf32>
    %412 = arith.addf %391, %396 : vector<4x2x5xf32>
    %413 = arith.addf %401, %406 : vector<4x2x5xf32>
    %414 = arith.addf %411, %103 : vector<4x2x5xf32>
    %415 = arith.addf %412, %413 : vector<4x2x5xf32>
    %416 = arith.addf %415, %414 : vector<4x2x5xf32>
    %417 = vector.extract_strided_slice %416 {offsets = [0, 0, 0], sizes = [1, 2, 5], strides = [1, 1, 1]} : vector<4x2x5xf32> to vector<1x2x5xf32>
    %418 = vector.shape_cast %417 : vector<1x2x5xf32> to vector<2x5xf32>
    %419 = arith.negf %418 : vector<2x5xf32>
    %420 = math.exp %419 : vector<2x5xf32>
    %cst_72 = arith.constant 1.000000e+00 : f32
    %421 = vector.broadcast %cst_72 : f32 to vector<2x5xf32>
    %422 = arith.addf %421, %420 : vector<2x5xf32>
    %423 = arith.divf %421, %422 : vector<2x5xf32>
    %424 = vector.extract_strided_slice %416 {offsets = [1, 0, 0], sizes = [1, 2, 5], strides = [1, 1, 1]} : vector<4x2x5xf32> to vector<1x2x5xf32>
    %425 = vector.shape_cast %424 : vector<1x2x5xf32> to vector<2x5xf32>
    %426 = arith.negf %425 : vector<2x5xf32>
    %427 = math.exp %426 : vector<2x5xf32>
    %cst_73 = arith.constant 1.000000e+00 : f32
    %428 = vector.broadcast %cst_73 : f32 to vector<2x5xf32>
    %429 = arith.addf %428, %427 : vector<2x5xf32>
    %430 = arith.divf %428, %429 : vector<2x5xf32>
    %431 = vector.extract_strided_slice %416 {offsets = [2, 0, 0], sizes = [1, 2, 5], strides = [1, 1, 1]} : vector<4x2x5xf32> to vector<1x2x5xf32>
    %432 = vector.shape_cast %431 : vector<1x2x5xf32> to vector<2x5xf32>
    %433 = math.tanh %432 : vector<2x5xf32>
    %434 = vector.extract_strided_slice %416 {offsets = [3, 0, 0], sizes = [1, 2, 5], strides = [1, 1, 1]} : vector<4x2x5xf32> to vector<1x2x5xf32>
    %435 = vector.shape_cast %434 : vector<1x2x5xf32> to vector<2x5xf32>
    %436 = arith.negf %435 : vector<2x5xf32>
    %437 = math.exp %436 : vector<2x5xf32>
    %cst_74 = arith.constant 1.000000e+00 : f32
    %438 = vector.broadcast %cst_74 : f32 to vector<2x5xf32>
    %439 = arith.addf %438, %437 : vector<2x5xf32>
    %440 = arith.divf %438, %439 : vector<2x5xf32>
    %441 = arith.mulf %430, %384 : vector<2x5xf32>
    %442 = arith.mulf %423, %433 : vector<2x5xf32>
    %443 = arith.addf %441, %442 : vector<2x5xf32>
    %444 = math.tanh %443 : vector<2x5xf32>
    %445 = arith.mulf %440, %444 : vector<2x5xf32>
    %446 = vector.extract_strided_slice %445 {offsets = [0, 0], sizes = [2, 1], strides = [1, 1]} : vector<2x5xf32> to vector<2x1xf32>
    %447 = vector.shape_cast %446 : vector<2x1xf32> to vector<1x2x1xf32>
    %448 = vector.shape_cast %447 : vector<1x2x1xf32> to vector<1x2x1xf32>
    %449 = vector.broadcast %448 : vector<1x2x1xf32> to vector<4x2x5xf32>
    %450 = arith.mulf %449, %5 : vector<4x2x5xf32>
    %451 = vector.extract_strided_slice %445 {offsets = [0, 1], sizes = [2, 1], strides = [1, 1]} : vector<2x5xf32> to vector<2x1xf32>
    %452 = vector.shape_cast %451 : vector<2x1xf32> to vector<1x2x1xf32>
    %453 = vector.shape_cast %452 : vector<1x2x1xf32> to vector<1x2x1xf32>
    %454 = vector.broadcast %453 : vector<1x2x1xf32> to vector<4x2x5xf32>
    %455 = arith.mulf %454, %10 : vector<4x2x5xf32>
    %456 = vector.extract_strided_slice %445 {offsets = [0, 2], sizes = [2, 1], strides = [1, 1]} : vector<2x5xf32> to vector<2x1xf32>
    %457 = vector.shape_cast %456 : vector<2x1xf32> to vector<1x2x1xf32>
    %458 = vector.shape_cast %457 : vector<1x2x1xf32> to vector<1x2x1xf32>
    %459 = vector.broadcast %458 : vector<1x2x1xf32> to vector<4x2x5xf32>
    %460 = arith.mulf %459, %15 : vector<4x2x5xf32>
    %461 = vector.extract_strided_slice %445 {offsets = [0, 3], sizes = [2, 1], strides = [1, 1]} : vector<2x5xf32> to vector<2x1xf32>
    %462 = vector.shape_cast %461 : vector<2x1xf32> to vector<1x2x1xf32>
    %463 = vector.shape_cast %462 : vector<1x2x1xf32> to vector<1x2x1xf32>
    %464 = vector.broadcast %463 : vector<1x2x1xf32> to vector<4x2x5xf32>
    %465 = arith.mulf %464, %20 : vector<4x2x5xf32>
    %466 = vector.extract_strided_slice %445 {offsets = [0, 4], sizes = [2, 1], strides = [1, 1]} : vector<2x5xf32> to vector<2x1xf32>
    %467 = vector.shape_cast %466 : vector<2x1xf32> to vector<1x2x1xf32>
    %468 = vector.shape_cast %467 : vector<1x2x1xf32> to vector<1x2x1xf32>
    %469 = vector.broadcast %468 : vector<1x2x1xf32> to vector<4x2x5xf32>
    %470 = arith.mulf %469, %25 : vector<4x2x5xf32>
    %471 = arith.addf %450, %455 : vector<4x2x5xf32>
    %472 = arith.addf %460, %465 : vector<4x2x5xf32>
    %473 = arith.addf %470, %118 : vector<4x2x5xf32>
    %474 = arith.addf %471, %472 : vector<4x2x5xf32>
    %475 = arith.addf %474, %473 : vector<4x2x5xf32>
    %476 = vector.extract_strided_slice %475 {offsets = [0, 0, 0], sizes = [1, 2, 5], strides = [1, 1, 1]} : vector<4x2x5xf32> to vector<1x2x5xf32>
    %477 = vector.shape_cast %476 : vector<1x2x5xf32> to vector<2x5xf32>
    %478 = arith.negf %477 : vector<2x5xf32>
    %479 = math.exp %478 : vector<2x5xf32>
    %cst_75 = arith.constant 1.000000e+00 : f32
    %480 = vector.broadcast %cst_75 : f32 to vector<2x5xf32>
    %481 = arith.addf %480, %479 : vector<2x5xf32>
    %482 = arith.divf %480, %481 : vector<2x5xf32>
    %483 = vector.extract_strided_slice %475 {offsets = [1, 0, 0], sizes = [1, 2, 5], strides = [1, 1, 1]} : vector<4x2x5xf32> to vector<1x2x5xf32>
    %484 = vector.shape_cast %483 : vector<1x2x5xf32> to vector<2x5xf32>
    %485 = arith.negf %484 : vector<2x5xf32>
    %486 = math.exp %485 : vector<2x5xf32>
    %cst_76 = arith.constant 1.000000e+00 : f32
    %487 = vector.broadcast %cst_76 : f32 to vector<2x5xf32>
    %488 = arith.addf %487, %486 : vector<2x5xf32>
    %489 = arith.divf %487, %488 : vector<2x5xf32>
    %490 = vector.extract_strided_slice %475 {offsets = [2, 0, 0], sizes = [1, 2, 5], strides = [1, 1, 1]} : vector<4x2x5xf32> to vector<1x2x5xf32>
    %491 = vector.shape_cast %490 : vector<1x2x5xf32> to vector<2x5xf32>
    %492 = math.tanh %491 : vector<2x5xf32>
    %493 = vector.extract_strided_slice %475 {offsets = [3, 0, 0], sizes = [1, 2, 5], strides = [1, 1, 1]} : vector<4x2x5xf32> to vector<1x2x5xf32>
    %494 = vector.shape_cast %493 : vector<1x2x5xf32> to vector<2x5xf32>
    %495 = arith.negf %494 : vector<2x5xf32>
    %496 = math.exp %495 : vector<2x5xf32>
    %cst_77 = arith.constant 1.000000e+00 : f32
    %497 = vector.broadcast %cst_77 : f32 to vector<2x5xf32>
    %498 = arith.addf %497, %496 : vector<2x5xf32>
    %499 = arith.divf %497, %498 : vector<2x5xf32>
    %500 = arith.mulf %489, %443 : vector<2x5xf32>
    %501 = arith.mulf %482, %492 : vector<2x5xf32>
    %502 = arith.addf %500, %501 : vector<2x5xf32>
    %503 = math.tanh %502 : vector<2x5xf32>
    %504 = arith.mulf %499, %503 : vector<2x5xf32>
    %505 = vector.extract_strided_slice %504 {offsets = [0, 0], sizes = [2, 1], strides = [1, 1]} : vector<2x5xf32> to vector<2x1xf32>
    %506 = vector.shape_cast %505 : vector<2x1xf32> to vector<1x2x1xf32>
    %507 = vector.shape_cast %506 : vector<1x2x1xf32> to vector<1x2x1xf32>
    %508 = vector.broadcast %507 : vector<1x2x1xf32> to vector<4x2x5xf32>
    %509 = arith.mulf %508, %5 : vector<4x2x5xf32>
    %510 = vector.extract_strided_slice %504 {offsets = [0, 1], sizes = [2, 1], strides = [1, 1]} : vector<2x5xf32> to vector<2x1xf32>
    %511 = vector.shape_cast %510 : vector<2x1xf32> to vector<1x2x1xf32>
    %512 = vector.shape_cast %511 : vector<1x2x1xf32> to vector<1x2x1xf32>
    %513 = vector.broadcast %512 : vector<1x2x1xf32> to vector<4x2x5xf32>
    %514 = arith.mulf %513, %10 : vector<4x2x5xf32>
    %515 = vector.extract_strided_slice %504 {offsets = [0, 2], sizes = [2, 1], strides = [1, 1]} : vector<2x5xf32> to vector<2x1xf32>
    %516 = vector.shape_cast %515 : vector<2x1xf32> to vector<1x2x1xf32>
    %517 = vector.shape_cast %516 : vector<1x2x1xf32> to vector<1x2x1xf32>
    %518 = vector.broadcast %517 : vector<1x2x1xf32> to vector<4x2x5xf32>
    %519 = arith.mulf %518, %15 : vector<4x2x5xf32>
    %520 = vector.extract_strided_slice %504 {offsets = [0, 3], sizes = [2, 1], strides = [1, 1]} : vector<2x5xf32> to vector<2x1xf32>
    %521 = vector.shape_cast %520 : vector<2x1xf32> to vector<1x2x1xf32>
    %522 = vector.shape_cast %521 : vector<1x2x1xf32> to vector<1x2x1xf32>
    %523 = vector.broadcast %522 : vector<1x2x1xf32> to vector<4x2x5xf32>
    %524 = arith.mulf %523, %20 : vector<4x2x5xf32>
    %525 = vector.extract_strided_slice %504 {offsets = [0, 4], sizes = [2, 1], strides = [1, 1]} : vector<2x5xf32> to vector<2x1xf32>
    %526 = vector.shape_cast %525 : vector<2x1xf32> to vector<1x2x1xf32>
    %527 = vector.shape_cast %526 : vector<1x2x1xf32> to vector<1x2x1xf32>
    %528 = vector.broadcast %527 : vector<1x2x1xf32> to vector<4x2x5xf32>
    %529 = arith.mulf %528, %25 : vector<4x2x5xf32>
    %530 = arith.addf %509, %514 : vector<4x2x5xf32>
    %531 = arith.addf %519, %524 : vector<4x2x5xf32>
    %532 = arith.addf %529, %133 : vector<4x2x5xf32>
    %533 = arith.addf %530, %531 : vector<4x2x5xf32>
    %534 = arith.addf %533, %532 : vector<4x2x5xf32>
    %535 = vector.extract_strided_slice %534 {offsets = [0, 0, 0], sizes = [1, 2, 5], strides = [1, 1, 1]} : vector<4x2x5xf32> to vector<1x2x5xf32>
    %536 = vector.shape_cast %535 : vector<1x2x5xf32> to vector<2x5xf32>
    %537 = arith.negf %536 : vector<2x5xf32>
    %538 = math.exp %537 : vector<2x5xf32>
    %cst_78 = arith.constant 1.000000e+00 : f32
    %539 = vector.broadcast %cst_78 : f32 to vector<2x5xf32>
    %540 = arith.addf %539, %538 : vector<2x5xf32>
    %541 = arith.divf %539, %540 : vector<2x5xf32>
    %542 = vector.extract_strided_slice %534 {offsets = [1, 0, 0], sizes = [1, 2, 5], strides = [1, 1, 1]} : vector<4x2x5xf32> to vector<1x2x5xf32>
    %543 = vector.shape_cast %542 : vector<1x2x5xf32> to vector<2x5xf32>
    %544 = arith.negf %543 : vector<2x5xf32>
    %545 = math.exp %544 : vector<2x5xf32>
    %cst_79 = arith.constant 1.000000e+00 : f32
    %546 = vector.broadcast %cst_79 : f32 to vector<2x5xf32>
    %547 = arith.addf %546, %545 : vector<2x5xf32>
    %548 = arith.divf %546, %547 : vector<2x5xf32>
    %549 = vector.extract_strided_slice %534 {offsets = [2, 0, 0], sizes = [1, 2, 5], strides = [1, 1, 1]} : vector<4x2x5xf32> to vector<1x2x5xf32>
    %550 = vector.shape_cast %549 : vector<1x2x5xf32> to vector<2x5xf32>
    %551 = math.tanh %550 : vector<2x5xf32>
    %552 = vector.extract_strided_slice %534 {offsets = [3, 0, 0], sizes = [1, 2, 5], strides = [1, 1, 1]} : vector<4x2x5xf32> to vector<1x2x5xf32>
    %553 = vector.shape_cast %552 : vector<1x2x5xf32> to vector<2x5xf32>
    %554 = arith.negf %553 : vector<2x5xf32>
    %555 = math.exp %554 : vector<2x5xf32>
    %cst_80 = arith.constant 1.000000e+00 : f32
    %556 = vector.broadcast %cst_80 : f32 to vector<2x5xf32>
    %557 = arith.addf %556, %555 : vector<2x5xf32>
    %558 = arith.divf %556, %557 : vector<2x5xf32>
    %559 = arith.mulf %548, %502 : vector<2x5xf32>
    %560 = arith.mulf %541, %551 : vector<2x5xf32>
    %561 = arith.addf %559, %560 : vector<2x5xf32>
    %562 = math.tanh %561 : vector<2x5xf32>
    %563 = arith.mulf %558, %562 : vector<2x5xf32>
    %564 = vector.extract_strided_slice %563 {offsets = [0, 0], sizes = [2, 1], strides = [1, 1]} : vector<2x5xf32> to vector<2x1xf32>
    %565 = vector.shape_cast %564 : vector<2x1xf32> to vector<1x2x1xf32>
    %566 = vector.shape_cast %565 : vector<1x2x1xf32> to vector<1x2x1xf32>
    %567 = vector.broadcast %566 : vector<1x2x1xf32> to vector<4x2x5xf32>
    %568 = arith.mulf %567, %5 : vector<4x2x5xf32>
    %569 = vector.extract_strided_slice %563 {offsets = [0, 1], sizes = [2, 1], strides = [1, 1]} : vector<2x5xf32> to vector<2x1xf32>
    %570 = vector.shape_cast %569 : vector<2x1xf32> to vector<1x2x1xf32>
    %571 = vector.shape_cast %570 : vector<1x2x1xf32> to vector<1x2x1xf32>
    %572 = vector.broadcast %571 : vector<1x2x1xf32> to vector<4x2x5xf32>
    %573 = arith.mulf %572, %10 : vector<4x2x5xf32>
    %574 = vector.extract_strided_slice %563 {offsets = [0, 2], sizes = [2, 1], strides = [1, 1]} : vector<2x5xf32> to vector<2x1xf32>
    %575 = vector.shape_cast %574 : vector<2x1xf32> to vector<1x2x1xf32>
    %576 = vector.shape_cast %575 : vector<1x2x1xf32> to vector<1x2x1xf32>
    %577 = vector.broadcast %576 : vector<1x2x1xf32> to vector<4x2x5xf32>
    %578 = arith.mulf %577, %15 : vector<4x2x5xf32>
    %579 = vector.extract_strided_slice %563 {offsets = [0, 3], sizes = [2, 1], strides = [1, 1]} : vector<2x5xf32> to vector<2x1xf32>
    %580 = vector.shape_cast %579 : vector<2x1xf32> to vector<1x2x1xf32>
    %581 = vector.shape_cast %580 : vector<1x2x1xf32> to vector<1x2x1xf32>
    %582 = vector.broadcast %581 : vector<1x2x1xf32> to vector<4x2x5xf32>
    %583 = arith.mulf %582, %20 : vector<4x2x5xf32>
    %584 = vector.extract_strided_slice %563 {offsets = [0, 4], sizes = [2, 1], strides = [1, 1]} : vector<2x5xf32> to vector<2x1xf32>
    %585 = vector.shape_cast %584 : vector<2x1xf32> to vector<1x2x1xf32>
    %586 = vector.shape_cast %585 : vector<1x2x1xf32> to vector<1x2x1xf32>
    %587 = vector.broadcast %586 : vector<1x2x1xf32> to vector<4x2x5xf32>
    %588 = arith.mulf %587, %25 : vector<4x2x5xf32>
    %589 = arith.addf %568, %573 : vector<4x2x5xf32>
    %590 = arith.addf %578, %583 : vector<4x2x5xf32>
    %591 = arith.addf %588, %148 : vector<4x2x5xf32>
    %592 = arith.addf %589, %590 : vector<4x2x5xf32>
    %593 = arith.addf %592, %591 : vector<4x2x5xf32>
    %594 = vector.extract_strided_slice %593 {offsets = [0, 0, 0], sizes = [1, 2, 5], strides = [1, 1, 1]} : vector<4x2x5xf32> to vector<1x2x5xf32>
    %595 = vector.shape_cast %594 : vector<1x2x5xf32> to vector<2x5xf32>
    %596 = arith.negf %595 : vector<2x5xf32>
    %597 = math.exp %596 : vector<2x5xf32>
    %cst_81 = arith.constant 1.000000e+00 : f32
    %598 = vector.broadcast %cst_81 : f32 to vector<2x5xf32>
    %599 = arith.addf %598, %597 : vector<2x5xf32>
    %600 = arith.divf %598, %599 : vector<2x5xf32>
    %601 = vector.extract_strided_slice %593 {offsets = [1, 0, 0], sizes = [1, 2, 5], strides = [1, 1, 1]} : vector<4x2x5xf32> to vector<1x2x5xf32>
    %602 = vector.shape_cast %601 : vector<1x2x5xf32> to vector<2x5xf32>
    %603 = arith.negf %602 : vector<2x5xf32>
    %604 = math.exp %603 : vector<2x5xf32>
    %cst_82 = arith.constant 1.000000e+00 : f32
    %605 = vector.broadcast %cst_82 : f32 to vector<2x5xf32>
    %606 = arith.addf %605, %604 : vector<2x5xf32>
    %607 = arith.divf %605, %606 : vector<2x5xf32>
    %608 = vector.extract_strided_slice %593 {offsets = [2, 0, 0], sizes = [1, 2, 5], strides = [1, 1, 1]} : vector<4x2x5xf32> to vector<1x2x5xf32>
    %609 = vector.shape_cast %608 : vector<1x2x5xf32> to vector<2x5xf32>
    %610 = math.tanh %609 : vector<2x5xf32>
    %611 = vector.extract_strided_slice %593 {offsets = [3, 0, 0], sizes = [1, 2, 5], strides = [1, 1, 1]} : vector<4x2x5xf32> to vector<1x2x5xf32>
    %612 = vector.shape_cast %611 : vector<1x2x5xf32> to vector<2x5xf32>
    %613 = arith.negf %612 : vector<2x5xf32>
    %614 = math.exp %613 : vector<2x5xf32>
    %cst_83 = arith.constant 1.000000e+00 : f32
    %615 = vector.broadcast %cst_83 : f32 to vector<2x5xf32>
    %616 = arith.addf %615, %614 : vector<2x5xf32>
    %617 = arith.divf %615, %616 : vector<2x5xf32>
    %618 = arith.mulf %607, %561 : vector<2x5xf32>
    %619 = arith.mulf %600, %610 : vector<2x5xf32>
    %620 = arith.addf %618, %619 : vector<2x5xf32>
    %621 = math.tanh %620 : vector<2x5xf32>
    %622 = arith.mulf %617, %621 : vector<2x5xf32>
    %623 = vector.extract_strided_slice %622 {offsets = [0, 0], sizes = [2, 1], strides = [1, 1]} : vector<2x5xf32> to vector<2x1xf32>
    %c0_84 = arith.constant 0 : index
    %c0_85 = arith.constant 0 : index
    %624 = vector.load %arg3[%c0_84, %c0_85] : memref<5x10xf32, #tpu.memory_space<vmem>>, vector<1x10xf32>
    %625 = vector.broadcast %623 : vector<2x1xf32> to vector<2x10xf32>
    %626 = vector.broadcast %624 : vector<1x10xf32> to vector<2x10xf32>
    %627 = arith.mulf %625, %626 : vector<2x10xf32>
    %628 = vector.extract_strided_slice %622 {offsets = [0, 1], sizes = [2, 1], strides = [1, 1]} : vector<2x5xf32> to vector<2x1xf32>
    %c1_86 = arith.constant 1 : index
    %c0_87 = arith.constant 0 : index
    %629 = vector.load %arg3[%c1_86, %c0_87] : memref<5x10xf32, #tpu.memory_space<vmem>>, vector<1x10xf32>
    %630 = vector.broadcast %628 : vector<2x1xf32> to vector<2x10xf32>
    %631 = vector.broadcast %629 : vector<1x10xf32> to vector<2x10xf32>
    %632 = arith.mulf %630, %631 : vector<2x10xf32>
    %633 = vector.extract_strided_slice %622 {offsets = [0, 2], sizes = [2, 1], strides = [1, 1]} : vector<2x5xf32> to vector<2x1xf32>
    %c2_88 = arith.constant 2 : index
    %c0_89 = arith.constant 0 : index
    %634 = vector.load %arg3[%c2_88, %c0_89] : memref<5x10xf32, #tpu.memory_space<vmem>>, vector<1x10xf32>
    %635 = vector.broadcast %633 : vector<2x1xf32> to vector<2x10xf32>
    %636 = vector.broadcast %634 : vector<1x10xf32> to vector<2x10xf32>
    %637 = arith.mulf %635, %636 : vector<2x10xf32>
    %638 = vector.extract_strided_slice %622 {offsets = [0, 3], sizes = [2, 1], strides = [1, 1]} : vector<2x5xf32> to vector<2x1xf32>
    %c3_90 = arith.constant 3 : index
    %c0_91 = arith.constant 0 : index
    %639 = vector.load %arg3[%c3_90, %c0_91] : memref<5x10xf32, #tpu.memory_space<vmem>>, vector<1x10xf32>
    %640 = vector.broadcast %638 : vector<2x1xf32> to vector<2x10xf32>
    %641 = vector.broadcast %639 : vector<1x10xf32> to vector<2x10xf32>
    %642 = arith.mulf %640, %641 : vector<2x10xf32>
    %643 = vector.extract_strided_slice %622 {offsets = [0, 4], sizes = [2, 1], strides = [1, 1]} : vector<2x5xf32> to vector<2x1xf32>
    %c4_92 = arith.constant 4 : index
    %c0_93 = arith.constant 0 : index
    %644 = vector.load %arg3[%c4_92, %c0_93] : memref<5x10xf32, #tpu.memory_space<vmem>>, vector<1x10xf32>
    %645 = vector.broadcast %643 : vector<2x1xf32> to vector<2x10xf32>
    %646 = vector.broadcast %644 : vector<1x10xf32> to vector<2x10xf32>
    %647 = arith.mulf %645, %646 : vector<2x10xf32>
    %648 = arith.addf %627, %632 : vector<2x10xf32>
    %649 = arith.addf %637, %642 : vector<2x10xf32>
    %650 = arith.addf %648, %649 : vector<2x10xf32>
    %651 = arith.addf %650, %647 : vector<2x10xf32>
    %c0_94 = arith.constant 0 : index
    %c0_95 = arith.constant 0 : index
    %652 = vector.load %arg4[%c0_94, %c0_95] : memref<1x10xf32, #tpu.memory_space<vmem>>, vector<1x10xf32>
    %653 = vector.broadcast %652 : vector<1x10xf32> to vector<2x10xf32>
    %654 = arith.addf %651, %653 : vector<2x10xf32>
    %655 = math.tanh %654 : vector<2x10xf32>
    %c0_96 = arith.constant 0 : index
    %c0_97 = arith.constant 0 : index
    %656 = vector.load %arg5[%c0_96, %c0_97] : memref<10x64xf32, #tpu.memory_space<vmem>>, vector<10x64xf32>
    %cst_98 = arith.constant dense<0.000000e+00> : vector<2x64xf32>
    %657 = tpu.matmul %655, %656, %cst_98 {dimension_numbers = #tpu.dot_dimension_numbers<[1], [0], [0], [1], [0, 0, 1, 1], [], []>} : vector<2x10xf32>, vector<10x64xf32>, vector<2x64xf32> -> vector<2x64xf32>
    %c0_99 = arith.constant 0 : index
    %c0_100 = arith.constant 0 : index
    %658 = vector.load %arg6[%c0_99, %c0_100] : memref<1x64xf32, #tpu.memory_space<vmem>>, vector<1x64xf32>
    %659 = vector.broadcast %658 : vector<1x64xf32> to vector<2x64xf32>
    %660 = arith.addf %657, %659 : vector<2x64xf32>
    %661 = math.tanh %660 : vector<2x64xf32>
    %c0_101 = arith.constant 0 : index
    %c0_102 = arith.constant 0 : index
    %662 = vector.load %arg7[%c0_101, %c0_102] : memref<1x64xf32, #tpu.memory_space<vmem>>, vector<1x64xf32>
    %663 = vector.broadcast %662 : vector<1x64xf32> to vector<2x64xf32>
    %664 = arith.mulf %661, %663 : vector<2x64xf32>
    %cst_103 = arith.constant dense<0.000000e+00> : vector<2xf32>
    %665 = vector.multi_reduction <add>, %664, %cst_103 [1] : vector<2x64xf32> to vector<2xf32>
    %666 = vector.shape_cast %665 : vector<2xf32> to vector<2x1xf32>
    %c0_104 = arith.constant 0 : index
    %c0_105 = arith.constant 0 : index
    %667 = vector.load %arg8[%c0_104, %c0_105] : memref<1x1xf32, #tpu.memory_space<vmem>>, vector<1x1xf32>
    %668 = vector.broadcast %667 : vector<1x1xf32> to vector<2x1xf32>
    %669 = arith.addf %666, %668 : vector<2x1xf32>
    %c0_106 = arith.constant 0 : index
    %c0_107 = arith.constant 0 : index
    %670 = vector.load %arg9[%c0_106, %c0_107] : memref<2x1xf32, #tpu.memory_space<vmem>>, vector<2x1xf32>
    tpu.vector_store %arg9[%c0_106, %c0_107], %669 {strides = array<i32>} : memref<2x1xf32, #tpu.memory_space<vmem>>, vector<2x1xf32>,
    %c0_108 = arith.constant 0 : index
    %c0_109 = arith.constant 0 : index
    %671 = vector.load %arg10[%c0_108, %c0_109] : memref<2x5xf32, #tpu.memory_space<vmem>>, vector<2x5xf32>
    tpu.vector_store %arg10[%c0_108, %c0_109], %622 {strides = array<i32>} : memref<2x5xf32, #tpu.memory_space<vmem>>, vector<2x5xf32>,
    return
  }
}

</mosaic_0001>

<llo_original>
// kernel: constraint_threshold_forward.1
$region0: #{constraint_threshold_forward.1}
  #allocation0 [shape = 'u32[]', space=smem, size = 0x4, offset = 0x4, fixed_abs, tag = 'smem constant byte address 0x4 - core index']
  #allocation1 [shape = 'u32[144,128]{1,0:T(1,128)}', space=vmem, size = 0x12000, scoped, tag = 'internal scratch']
  #allocation2 [shape = 'f32[1,1]{1,0:T(1,128)S(1)}', space=vmem, size = 0x200, scoped, tag = 'scoped memory for constraint_threshold_forward.1']
  %s0 = inlined_call_operand.vmem [shape: s32[2,8], index: 0, kind: input, shape index: {}]
  %s1 = inlined_call_operand.vmem [shape: f32[30,4,5], index: 1, kind: input, shape index: {}]
  %s2 = inlined_call_operand.vmem [shape: f32[5,4,5], index: 2, kind: input, shape index: {}]
  %s3 = inlined_call_operand.vmem [shape: f32[5,10], index: 3, kind: input, shape index: {}]
  %s4 = inlined_call_operand.vmem [shape: f32[1,10], index: 4, kind: input, shape index: {}]
  %s5 = inlined_call_operand.vmem [shape: f32[10,64], index: 5, kind: input, shape index: {}]
  %s6 = inlined_call_operand.vmem [shape: f32[1,64], index: 6, kind: input, shape index: {}]
  %s7 = inlined_call_operand.vmem [shape: f32[1,64], index: 7, kind: input, shape index: {}]
  %s8 = inlined_call_operand.<no memory space> [shape: f32[1,1], index: 8, kind: input, shape index: {}]
  %s9 = inlined_call_operand.vmem [shape: f32[2,1], index: 9, kind: output, shape index: {0}]
  %s10 = inlined_call_operand.hbm [shape: f32[2,5], index: 10, kind: output, shape index: {1}]
  %11 = xla_tuple %s9, %s10
  %s12 = sld [smem:[#allocation0]]
  $region58: #{constraint_threshold_forward.1} parent=0
    _
  %s14 = ssub.s32 1, %s12
  %s15 = scalar_select 0, %s14, %s12
  %v16 = vstv %s8
  %17 = vst [vmem:[#allocation2] sm:$0x1] %v16
  $region1: #{constraint_threshold_forward.1} parent=0
    #allocation3 [shape = 'u8[1024]{0}', space=smem, size = 0x400, scoped, tag = 'input window, operand 0, single buffered']
    #allocation4 [shape = 's32[1]{0}', space=sflag, size = 0x4, scoped, tag = 'scoped memory for constraint_threshold_forward.1']
    #allocation5 [shape = 's32[1]{0}', space=sflag, size = 0x4, scoped, tag = 'scoped memory for constraint_threshold_forward.1']
    #allocation6 [shape = 'u8[1024]{0}', space=vmem, size = 0x400, scoped, tag = 'output window, operand 1, single buffered']
    %18 = vsyncpa [#allocation5], 0
    %19 = vsyncpa [#allocation4], 0
    // Predicated region
    $region2: #{constraint_threshold_forward.1} parent=1 // pred_check
      _
    $region3: #{constraint_threshold_forward.1} parent=1 // pred_check_branch
      %21 = sbr.rel (0) target = $region5
    $region4: #{constraint_threshold_forward.1} parent=1 // pred_region
      %s23 = ssub.s32 32, 32
      %24 = vsyncadd [#allocation5], %s23
      %s26 = sshll.u32 %s0, 4
      %s27 = int_to_ptr.vmem [resolvable:$true] %s26
      %29 = dma.vmem_to_smem %s27, 32, [#allocation3], [#allocation5]
    $region5: #{constraint_threshold_forward.1} parent=1 // pred_fallthru
      _
    // Predicated region
    $region6: #{constraint_threshold_forward.1} parent=1 // pred_check
      _
    $region7: #{constraint_threshold_forward.1} parent=1 // pred_check_branch
      %31 = sbr.rel (0) target = $region9
    $region8: #{constraint_threshold_forward.1} parent=1 // pred_region
      _
    $region9: #{constraint_threshold_forward.1} parent=1 // pred_fallthru
      _
    // Predicated region
    $region10: #{constraint_threshold_forward.1} parent=1 // pred_check
      _
    $region11: #{constraint_threshold_forward.1} parent=1 // pred_check_branch
      %33 = sbr.rel (0) target = $region13
    $region12: #{constraint_threshold_forward.1} parent=1 // pred_region
      _
    $region13: #{constraint_threshold_forward.1} parent=1 // pred_fallthru
      _
    // Predicated region
    $region14: #{constraint_threshold_forward.1} parent=1 // pred_check
      _
    $region15: #{constraint_threshold_forward.1} parent=1 // pred_check_branch
      %35 = sbr.rel (0) target = $region17
    $region16: #{constraint_threshold_forward.1} parent=1 // pred_region
      _
    $region17: #{constraint_threshold_forward.1} parent=1 // pred_fallthru
      _
    // Predicated region
    $region18: #{constraint_threshold_forward.1} parent=1 // pred_check
      _
    $region19: #{constraint_threshold_forward.1} parent=1 // pred_check_branch
      %37 = sbr.rel (0) target = $region21
    $region20: #{constraint_threshold_forward.1} parent=1 // pred_region
      _
    $region21: #{constraint_threshold_forward.1} parent=1 // pred_fallthru
      _
    // Predicated region
    $region22: #{constraint_threshold_forward.1} parent=1 // pred_check
      _
    $region23: #{constraint_threshold_forward.1} parent=1 // pred_check_branch
      %39 = sbr.rel (0) target = $region25
    $region24: #{constraint_threshold_forward.1} parent=1 // pred_region
      _
    $region25: #{constraint_threshold_forward.1} parent=1 // pred_fallthru
      _
    // Predicated region
    $region26: #{constraint_threshold_forward.1} parent=1 // pred_check
      _
    $region27: #{constraint_threshold_forward.1} parent=1 // pred_check_branch
      %41 = sbr.rel (0) target = $region29
    $region28: #{constraint_threshold_forward.1} parent=1 // pred_region
      _
    $region29: #{constraint_threshold_forward.1} parent=1 // pred_fallthru
      _
    // Predicated region
    $region30: #{constraint_threshold_forward.1} parent=1 // pred_check
      _
    $region31: #{constraint_threshold_forward.1} parent=1 // pred_check_branch
      %43 = sbr.rel (0) target = $region33
    $region32: #{constraint_threshold_forward.1} parent=1 // pred_region
      _
    $region33: #{constraint_threshold_forward.1} parent=1 // pred_fallthru
      _
    // Predicated region
    $region34: #{constraint_threshold_forward.1} parent=1 // pred_check
      _
    $region35: #{constraint_threshold_forward.1} parent=1 // pred_check_branch
      %45 = sbr.rel (0) target = $region37
    $region36: #{constraint_threshold_forward.1} parent=1 // pred_region
      _
    $region37: #{constraint_threshold_forward.1} parent=1 // pred_fallthru
      _
    // Predicated region
    $region38: #{constraint_threshold_forward.1} parent=1 // pred_check
      _
    $region39: #{constraint_threshold_forward.1} parent=1 // pred_check_branch
      %47 = sbr.rel (0) target = $region41
    $region40: #{constraint_threshold_forward.1} parent=1 // pred_region
      %48 = dma.done [#allocation5], 32
    $region41: #{constraint_threshold_forward.1} parent=1 // pred_fallthru
      _
    %49 = sfence
    %v50 = vld [vmem:[%s2] sm:$0xf]
    %v51 = vld [vmem:[%s2 + $0x4] sm:$0xf]
    %v52 = vld [vmem:[%s2 + $0x8] sm:$0xf]
    %v53 = vld [vmem:[%s2 + $0xc] sm:$0xf]
    %v54 = vld [vmem:[%s2 + $0x10] sm:$0xf]
    %v57 = vunpack.c.l.s4 1966171168
    %v58 = vunpack.c.0.s8 %v57
    %v59 = vlaneseq
    %v60 = vshrl.u32 %v59, 7
    %v61 = vsub.s32 %v58, %v60
    %v62 = vrot.slane %v50, %v61
    %v63 = vcombine.high %v62, %v62
    %v65 = vunpack.c.l.s4 1966171168
    %v66 = vunpack.c.0.s8 %v65
    %v67 = vlaneseq
    %v68 = vshrl.u32 %v67, 7
    %v69 = vsub.s32 %v66, %v68
    %v70 = vrot.slane %v62, %v69
    %v72 = vunpack.c.l.s4 1966171168
    %v73 = vunpack.c.0.s8 %v72
    %v74 = vlaneseq
    %v75 = vshrl.u32 %v74, 7
    %v76 = vsub.s32 %v73, %v75
    %v77 = vrot.slane %v63, %v76
    %v78 = vcombine.high %v70, %v70
    %v79 = vcombine.high %v77, %v77
    %v80 = vlaneseq
    %v81 = vshrl.u32 %v80, 7
    %v82 = vsub.s32 0, %v81
    %v83 = vrot.slane %v70, %v82
    %v84 = vlaneseq
    %v85 = vshrl.u32 %v84, 7
    %v86 = vsub.s32 0, %v85
    %v87 = vrot.slane %v77, %v86
    %v88 = vlaneseq
    %v89 = vshrl.u32 %v88, 7
    %v90 = vsub.s32 0, %v89
    %v91 = vrot.slane %v78, %v90
    %v92 = vlaneseq
    %v93 = vshrl.u32 %v92, 7
    %v94 = vsub.s32 0, %v93
    %v95 = vrot.slane %v79, %v94
    %v102 = vunpack.c.l.s4 1966171168
    %v103 = vunpack.c.0.s8 %v102
    %v104 = vlaneseq
    %v105 = vshrl.u32 %v104, 7
    %v106 = vsub.s32 %v103, %v105
    %v107 = vrot.slane %v51, %v106
    %v108 = vcombine.high %v107, %v107
    %v110 = vunpack.c.l.s4 1966171168
    %v111 = vunpack.c.0.s8 %v110
    %v112 = vlaneseq
    %v113 = vshrl.u32 %v112, 7
    %v114 = vsub.s32 %v111, %v113
    %v115 = vrot.slane %v107, %v114
    %v117 = vunpack.c.l.s4 1966171168
    %v118 = vunpack.c.0.s8 %v117
    %v119 = vlaneseq
    %v120 = vshrl.u32 %v119, 7
    %v121 = vsub.s32 %v118, %v120
    %v122 = vrot.slane %v108, %v121
    %v123 = vcombine.high %v115, %v115
    %v124 = vcombine.high %v122, %v122
    %v125 = vlaneseq
    %v126 = vshrl.u32 %v125, 7
    %v127 = vsub.s32 0, %v126
    %v128 = vrot.slane %v115, %v127
    %v129 = vlaneseq
    %v130 = vshrl.u32 %v129, 7
    %v131 = vsub.s32 0, %v130
    %v132 = vrot.slane %v122, %v131
    %v133 = vlaneseq
    %v134 = vshrl.u32 %v133, 7
    %v135 = vsub.s32 0, %v134
    %v136 = vrot.slane %v123, %v135
    %v137 = vlaneseq
    %v138 = vshrl.u32 %v137, 7
    %v139 = vsub.s32 0, %v138
    %v140 = vrot.slane %v124, %v139
    %v147 = vunpack.c.l.s4 1966171168
    %v148 = vunpack.c.0.s8 %v147
    %v149 = vlaneseq
    %v150 = vshrl.u32 %v149, 7
    %v151 = vsub.s32 %v148, %v150
    %v152 = vrot.slane %v52, %v151
    %v153 = vcombine.high %v152, %v152
    %v155 = vunpack.c.l.s4 1966171168
    %v156 = vunpack.c.0.s8 %v155
    %v157 = vlaneseq
    %v158 = vshrl.u32 %v157, 7
    %v159 = vsub.s32 %v156, %v158
    %v160 = vrot.slane %v152, %v159
    %v162 = vunpack.c.l.s4 1966171168
    %v163 = vunpack.c.0.s8 %v162
    %v164 = vlaneseq
    %v165 = vshrl.u32 %v164, 7
    %v166 = vsub.s32 %v163, %v165
    %v167 = vrot.slane %v153, %v166
    %v168 = vcombine.high %v160, %v160
    %v169 = vcombine.high %v167, %v167
    %v170 = vlaneseq
    %v171 = vshrl.u32 %v170, 7
    %v172 = vsub.s32 0, %v171
    %v173 = vrot.slane %v160, %v172
    %v174 = vlaneseq
    %v175 = vshrl.u32 %v174, 7
    %v176 = vsub.s32 0, %v175
    %v177 = vrot.slane %v167, %v176
    %v178 = vlaneseq
    %v179 = vshrl.u32 %v178, 7
    %v180 = vsub.s32 0, %v179
    %v181 = vrot.slane %v168, %v180
    %v182 = vlaneseq
    %v183 = vshrl.u32 %v182, 7
    %v184 = vsub.s32 0, %v183
    %v185 = vrot.slane %v169, %v184
    %v192 = vunpack.c.l.s4 1966171168
    %v193 = vunpack.c.0.s8 %v192
    %v194 = vlaneseq
    %v195 = vshrl.u32 %v194, 7
    %v196 = vsub.s32 %v193, %v195
    %v197 = vrot.slane %v53, %v196
    %v198 = vcombine.high %v197, %v197
    %v200 = vunpack.c.l.s4 1966171168
    %v201 = vunpack.c.0.s8 %v200
    %v202 = vlaneseq
    %v203 = vshrl.u32 %v202, 7
    %v204 = vsub.s32 %v201, %v203
    %v205 = vrot.slane %v197, %v204
    %v207 = vunpack.c.l.s4 1966171168
    %v208 = vunpack.c.0.s8 %v207
    %v209 = vlaneseq
    %v210 = vshrl.u32 %v209, 7
    %v211 = vsub.s32 %v208, %v210
    %v212 = vrot.slane %v198, %v211
    %v213 = vcombine.high %v205, %v205
    %v214 = vcombine.high %v212, %v212
    %v215 = vlaneseq
    %v216 = vshrl.u32 %v215, 7
    %v217 = vsub.s32 0, %v216
    %v218 = vrot.slane %v205, %v217
    %v219 = vlaneseq
    %v220 = vshrl.u32 %v219, 7
    %v221 = vsub.s32 0, %v220
    %v222 = vrot.slane %v212, %v221
    %v223 = vlaneseq
    %v224 = vshrl.u32 %v223, 7
    %v225 = vsub.s32 0, %v224
    %v226 = vrot.slane %v213, %v225
    %v227 = vlaneseq
    %v228 = vshrl.u32 %v227, 7
    %v229 = vsub.s32 0, %v228
    %v230 = vrot.slane %v214, %v229
    %v237 = vunpack.c.l.s4 1966171168
    %v238 = vunpack.c.0.s8 %v237
    %v239 = vlaneseq
    %v240 = vshrl.u32 %v239, 7
    %v241 = vsub.s32 %v238, %v240
    %v242 = vrot.slane %v54, %v241
    %v243 = vcombine.high %v242, %v242
    %v245 = vunpack.c.l.s4 1966171168
    %v246 = vunpack.c.0.s8 %v245
    %v247 = vlaneseq
    %v248 = vshrl.u32 %v247, 7
    %v249 = vsub.s32 %v246, %v248
    %v250 = vrot.slane %v242, %v249
    %v252 = vunpack.c.l.s4 1966171168
    %v253 = vunpack.c.0.s8 %v252
    %v254 = vlaneseq
    %v255 = vshrl.u32 %v254, 7
    %v256 = vsub.s32 %v253, %v255
    %v257 = vrot.slane %v243, %v256
    %v258 = vcombine.high %v250, %v250
    %v259 = vcombine.high %v257, %v257
    %v260 = vlaneseq
    %v261 = vshrl.u32 %v260, 7
    %v262 = vsub.s32 0, %v261
    %v263 = vrot.slane %v250, %v262
    %v264 = vlaneseq
    %v265 = vshrl.u32 %v264, 7
    %v266 = vsub.s32 0, %v265
    %v267 = vrot.slane %v257, %v266
    %v268 = vlaneseq
    %v269 = vshrl.u32 %v268, 7
    %v270 = vsub.s32 0, %v269
    %v271 = vrot.slane %v258, %v270
    %v272 = vlaneseq
    %v273 = vshrl.u32 %v272, 7
    %v274 = vsub.s32 0, %v273
    %v275 = vrot.slane %v259, %v274
    %v280 = vlaneseq
    %v281 = vshrl.u32 %v280, 7
    %vm282 = vcmp.eq.s32.totalorder %v281, 1
    %s283 = sld [smem:[#allocation3]]
    %s284 = smul.u32 %s283, 4
    %s285 = scalar_lea.vmem %s1, %s284
    %v286 = vld [vmem:[%s285] sm:$0xf]
    %v289 = vunpack.c.l.s4 1966171168
    %v290 = vunpack.c.0.s8 %v289
    %v291 = vlaneseq
    %v292 = vshrl.u32 %v291, 7
    %v293 = vsub.s32 %v290, %v292
    %v294 = vrot.slane %v286, %v293
    %v295 = vcombine.high %v294, %v294
    %v297 = vunpack.c.l.s4 1966171168
    %v298 = vunpack.c.0.s8 %v297
    %v299 = vlaneseq
    %v300 = vshrl.u32 %v299, 7
    %v301 = vsub.s32 %v298, %v300
    %v302 = vrot.slane %v294, %v301
    %v304 = vunpack.c.l.s4 1966171168
    %v305 = vunpack.c.0.s8 %v304
    %v306 = vlaneseq
    %v307 = vshrl.u32 %v306, 7
    %v308 = vsub.s32 %v305, %v307
    %v309 = vrot.slane %v295, %v308
    %v310 = vcombine.high %v302, %v302
    %v311 = vcombine.high %v309, %v309
    %v312 = vlaneseq
    %v313 = vshrl.u32 %v312, 7
    %v314 = vsub.s32 0, %v313
    %v315 = vrot.slane %v302, %v314
    %v316 = vlaneseq
    %v317 = vshrl.u32 %v316, 7
    %v318 = vsub.s32 0, %v317
    %v319 = vrot.slane %v309, %v318
    %v320 = vlaneseq
    %v321 = vshrl.u32 %v320, 7
    %v322 = vsub.s32 0, %v321
    %v323 = vrot.slane %v310, %v322
    %v324 = vlaneseq
    %v325 = vshrl.u32 %v324, 7
    %v326 = vsub.s32 0, %v325
    %v327 = vrot.slane %v311, %v326
    %s332 = sld [smem:[#allocation3 + $0x80]]
    %s333 = smul.u32 %s332, 4
    %s334 = scalar_lea.vmem %s1, %s333
    %v335 = vld [vmem:[%s334] sm:$0xf]
    %v338 = vunpack.c.l.s4 1966171168
    %v339 = vunpack.c.0.s8 %v338
    %v340 = vlaneseq
    %v341 = vshrl.u32 %v340, 7
    %v342 = vsub.s32 %v339, %v341
    %v343 = vrot.slane %v335, %v342
    %v344 = vcombine.high %v343, %v343
    %v346 = vunpack.c.l.s4 1966171168
    %v347 = vunpack.c.0.s8 %v346
    %v348 = vlaneseq
    %v349 = vshrl.u32 %v348, 7
    %v350 = vsub.s32 %v347, %v349
    %v351 = vrot.slane %v343, %v350
    %v353 = vunpack.c.l.s4 1966171168
    %v354 = vunpack.c.0.s8 %v353
    %v355 = vlaneseq
    %v356 = vshrl.u32 %v355, 7
    %v357 = vsub.s32 %v354, %v356
    %v358 = vrot.slane %v344, %v357
    %v359 = vcombine.high %v351, %v351
    %v360 = vcombine.high %v358, %v358
    %v361 = vlaneseq
    %v362 = vshrl.u32 %v361, 7
    %v363 = vsub.s32 0, %v362
    %v364 = vrot.slane %v351, %v363
    %v365 = vlaneseq
    %v366 = vshrl.u32 %v365, 7
    %v367 = vsub.s32 0, %v366
    %v368 = vrot.slane %v358, %v367
    %v369 = vlaneseq
    %v370 = vshrl.u32 %v369, 7
    %v371 = vsub.s32 0, %v370
    %v372 = vrot.slane %v359, %v371
    %v373 = vlaneseq
    %v374 = vshrl.u32 %v373, 7
    %v375 = vsub.s32 0, %v374
    %v376 = vrot.slane %v360, %v375
    %v381 = vsel %vm282, %v364, %v315
    %v382 = vsel %vm282, %v368, %v319
    %v383 = vsel %vm282, %v372, %v323
    %v384 = vsel %vm282, %v376, %v327
    %s385 = sld [smem:[#allocation3 + $0x1]]
    %s386 = smul.u32 %s385, 4
    %s387 = scalar_lea.vmem %s1, %s386
    %v388 = vld [vmem:[%s387] sm:$0xf]
    %v391 = vunpack.c.l.s4 1966171168
    %v392 = vunpack.c.0.s8 %v391
    %v393 = vlaneseq
    %v394 = vshrl.u32 %v393, 7
    %v395 = vsub.s32 %v392, %v394
    %v396 = vrot.slane %v388, %v395
    %v397 = vcombine.high %v396, %v396
    %v399 = vunpack.c.l.s4 1966171168
    %v400 = vunpack.c.0.s8 %v399
    %v401 = vlaneseq
    %v402 = vshrl.u32 %v401, 7
    %v403 = vsub.s32 %v400, %v402
    %v404 = vrot.slane %v396, %v403
    %v406 = vunpack.c.l.s4 1966171168
    %v407 = vunpack.c.0.s8 %v406
    %v408 = vlaneseq
    %v409 = vshrl.u32 %v408, 7
    %v410 = vsub.s32 %v407, %v409
    %v411 = vrot.slane %v397, %v410
    %v412 = vcombine.high %v404, %v404
    %v413 = vcombine.high %v411, %v411
    %v414 = vlaneseq
    %v415 = vshrl.u32 %v414, 7
    %v416 = vsub.s32 0, %v415
    %v417 = vrot.slane %v404, %v416
    %v418 = vlaneseq
    %v419 = vshrl.u32 %v418, 7
    %v420 = vsub.s32 0, %v419
    %v421 = vrot.slane %v411, %v420
    %v422 = vlaneseq
    %v423 = vshrl.u32 %v422, 7
    %v424 = vsub.s32 0, %v423
    %v425 = vrot.slane %v412, %v424
    %v426 = vlaneseq
    %v427 = vshrl.u32 %v426, 7
    %v428 = vsub.s32 0, %v427
    %v429 = vrot.slane %v413, %v428
    %s434 = sld [smem:[#allocation3 + $0x81]]
    %s435 = smul.u32 %s434, 4
    %s436 = scalar_lea.vmem %s1, %s435
    %v437 = vld [vmem:[%s436] sm:$0xf]
    %v440 = vunpack.c.l.s4 1966171168
    %v441 = vunpack.c.0.s8 %v440
    %v442 = vlaneseq
    %v443 = vshrl.u32 %v442, 7
    %v444 = vsub.s32 %v441, %v443
    %v445 = vrot.slane %v437, %v444
    %v446 = vcombine.high %v445, %v445
    %v448 = vunpack.c.l.s4 1966171168
    %v449 = vunpack.c.0.s8 %v448
    %v450 = vlaneseq
    %v451 = vshrl.u32 %v450, 7
    %v452 = vsub.s32 %v449, %v451
    %v453 = vrot.slane %v445, %v452
    %v455 = vunpack.c.l.s4 1966171168
    %v456 = vunpack.c.0.s8 %v455
    %v457 = vlaneseq
    %v458 = vshrl.u32 %v457, 7
    %v459 = vsub.s32 %v456, %v458
    %v460 = vrot.slane %v446, %v459
    %v461 = vcombine.high %v453, %v453
    %v462 = vcombine.high %v460, %v460
    %v463 = vlaneseq
    %v464 = vshrl.u32 %v463, 7
    %v465 = vsub.s32 0, %v464
    %v466 = vrot.slane %v453, %v465
    %v467 = vlaneseq
    %v468 = vshrl.u32 %v467, 7
    %v469 = vsub.s32 0, %v468
    %v470 = vrot.slane %v460, %v469
    %v471 = vlaneseq
    %v472 = vshrl.u32 %v471, 7
    %v473 = vsub.s32 0, %v472
    %v474 = vrot.slane %v461, %v473
    %v475 = vlaneseq
    %v476 = vshrl.u32 %v475, 7
    %v477 = vsub.s32 0, %v476
    %v478 = vrot.slane %v462, %v477
    %v483 = vsel %vm282, %v466, %v417
    %v484 = vsel %vm282, %v470, %v421
    %v485 = vsel %vm282, %v474, %v425
    %v486 = vsel %vm282, %v478, %v429
    %s487 = sld [smem:[#allocation3 + $0x2]]
    %s488 = smul.u32 %s487, 4
    %s489 = scalar_lea.vmem %s1, %s488
    %v490 = vld [vmem:[%s489] sm:$0xf]
    %v493 = vunpack.c.l.s4 1966171168
    %v494 = vunpack.c.0.s8 %v493
    %v495 = vlaneseq
    %v496 = vshrl.u32 %v495, 7
    %v497 = vsub.s32 %v494, %v496
    %v498 = vrot.slane %v490, %v497
    %v499 = vcombine.high %v498, %v498
    %v501 = vunpack.c.l.s4 1966171168
    %v502 = vunpack.c.0.s8 %v501
    %v503 = vlaneseq
    %v504 = vshrl.u32 %v503, 7
    %v505 = vsub.s32 %v502, %v504
    %v506 = vrot.slane %v498, %v505
    %v508 = vunpack.c.l.s4 1966171168
    %v509 = vunpack.c.0.s8 %v508
    %v510 = vlaneseq
    %v511 = vshrl.u32 %v510, 7
    %v512 = vsub.s32 %v509, %v511
    %v513 = vrot.slane %v499, %v512
    %v514 = vcombine.high %v506, %v506
    %v515 = vcombine.high %v513, %v513
    %v516 = vlaneseq
    %v517 = vshrl.u32 %v516, 7
    %v518 = vsub.s32 0, %v517
    %v519 = vrot.slane %v506, %v518
    %v520 = vlaneseq
    %v521 = vshrl.u32 %v520, 7
    %v522 = vsub.s32 0, %v521
    %v523 = vrot.slane %v513, %v522
    %v524 = vlaneseq
    %v525 = vshrl.u32 %v524, 7
    %v526 = vsub.s32 0, %v525
    %v527 = vrot.slane %v514, %v526
    %v528 = vlaneseq
    %v529 = vshrl.u32 %v528, 7
    %v530 = vsub.s32 0, %v529
    %v531 = vrot.slane %v515, %v530
    %s536 = sld [smem:[#allocation3 + $0x82]]
    %s537 = smul.u32 %s536, 4
    %s538 = scalar_lea.vmem %s1, %s537
    %v539 = vld [vmem:[%s538] sm:$0xf]
    %v542 = vunpack.c.l.s4 1966171168
    %v543 = vunpack.c.0.s8 %v542
    %v544 = vlaneseq
    %v545 = vshrl.u32 %v544, 7
    %v546 = vsub.s32 %v543, %v545
    %v547 = vrot.slane %v539, %v546
    %v548 = vcombine.high %v547, %v547
    %v550 = vunpack.c.l.s4 1966171168
    %v551 = vunpack.c.0.s8 %v550
    %v552 = vlaneseq
    %v553 = vshrl.u32 %v552, 7
    %v554 = vsub.s32 %v551, %v553
    %v555 = vrot.slane %v547, %v554
    %v557 = vunpack.c.l.s4 1966171168
    %v558 = vunpack.c.0.s8 %v557
    %v559 = vlaneseq
    %v560 = vshrl.u32 %v559, 7
    %v561 = vsub.s32 %v558, %v560
    %v562 = vrot.slane %v548, %v561
    %v563 = vcombine.high %v555, %v555
    %v564 = vcombine.high %v562, %v562
    %v565 = vlaneseq
    %v566 = vshrl.u32 %v565, 7
    %v567 = vsub.s32 0, %v566
    %v568 = vrot.slane %v555, %v567
    %v569 = vlaneseq
    %v570 = vshrl.u32 %v569, 7
    %v571 = vsub.s32 0, %v570
    %v572 = vrot.slane %v562, %v571
    %v573 = vlaneseq
    %v574 = vshrl.u32 %v573, 7
    %v575 = vsub.s32 0, %v574
    %v576 = vrot.slane %v563, %v575
    %v577 = vlaneseq
    %v578 = vshrl.u32 %v577, 7
    %v579 = vsub.s32 0, %v578
    %v580 = vrot.slane %v564, %v579
    %v585 = vsel %vm282, %v568, %v519
    %v586 = vsel %vm282, %v572, %v523
    %v587 = vsel %vm282, %v576, %v527
    %v588 = vsel %vm282, %v580, %v531
    %s589 = sld [smem:[#allocation3 + $0x3]]
    %s590 = smul.u32 %s589, 4
    %s591 = scalar_lea.vmem %s1, %s590
    %v592 = vld [vmem:[%s591] sm:$0xf]
    %v595 = vunpack.c.l.s4 1966171168
    %v596 = vunpack.c.0.s8 %v595
    %v597 = vlaneseq
    %v598 = vshrl.u32 %v597, 7
    %v599 = vsub.s32 %v596, %v598
    %v600 = vrot.slane %v592, %v599
    %v601 = vcombine.high %v600, %v600
    %v603 = vunpack.c.l.s4 1966171168
    %v604 = vunpack.c.0.s8 %v603
    %v605 = vlaneseq
    %v606 = vshrl.u32 %v605, 7
    %v607 = vsub.s32 %v604, %v606
    %v608 = vrot.slane %v600, %v607
    %v610 = vunpack.c.l.s4 1966171168
    %v611 = vunpack.c.0.s8 %v610
    %v612 = vlaneseq
    %v613 = vshrl.u32 %v612, 7
    %v614 = vsub.s32 %v611, %v613
    %v615 = vrot.slane %v601, %v614
    %v616 = vcombine.high %v608, %v608
    %v617 = vcombine.high %v615, %v615
    %v618 = vlaneseq
    %v619 = vshrl.u32 %v618, 7
    %v620 = vsub.s32 0, %v619
    %v621 = vrot.slane %v608, %v620
    %v622 = vlaneseq
    %v623 = vshrl.u32 %v622, 7
    %v624 = vsub.s32 0, %v623
    %v625 = vrot.slane %v615, %v624
    %v626 = vlaneseq
    %v627 = vshrl.u32 %v626, 7
    %v628 = vsub.s32 0, %v627
    %v629 = vrot.slane %v616, %v628
    %v630 = vlaneseq
    %v631 = vshrl.u32 %v630, 7
    %v632 = vsub.s32 0, %v631
    %v633 = vrot.slane %v617, %v632
    %s638 = sld [smem:[#allocation3 + $0x83]]
    %s639 = smul.u32 %s638, 4
    %s640 = scalar_lea.vmem %s1, %s639
    %v641 = vld [vmem:[%s640] sm:$0xf]
    %v644 = vunpack.c.l.s4 1966171168
    %v645 = vunpack.c.0.s8 %v644
    %v646 = vlaneseq
    %v647 = vshrl.u32 %v646, 7
    %v648 = vsub.s32 %v645, %v647
    %v649 = vrot.slane %v641, %v648
    %v650 = vcombine.high %v649, %v649
    %v652 = vunpack.c.l.s4 1966171168
    %v653 = vunpack.c.0.s8 %v652
    %v654 = vlaneseq
    %v655 = vshrl.u32 %v654, 7
    %v656 = vsub.s32 %v653, %v655
    %v657 = vrot.slane %v649, %v656
    %v659 = vunpack.c.l.s4 1966171168
    %v660 = vunpack.c.0.s8 %v659
    %v661 = vlaneseq
    %v662 = vshrl.u32 %v661, 7
    %v663 = vsub.s32 %v660, %v662
    %v664 = vrot.slane %v650, %v663
    %v665 = vcombine.high %v657, %v657
    %v666 = vcombine.high %v664, %v664
    %v667 = vlaneseq
    %v668 = vshrl.u32 %v667, 7
    %v669 = vsub.s32 0, %v668
    %v670 = vrot.slane %v657, %v669
    %v671 = vlaneseq
    %v672 = vshrl.u32 %v671, 7
    %v673 = vsub.s32 0, %v672
    %v674 = vrot.slane %v664, %v673
    %v675 = vlaneseq
    %v676 = vshrl.u32 %v675, 7
    %v677 = vsub.s32 0, %v676
    %v678 = vrot.slane %v665, %v677
    %v679 = vlaneseq
    %v680 = vshrl.u32 %v679, 7
    %v681 = vsub.s32 0, %v680
    %v682 = vrot.slane %v666, %v681
    %v687 = vsel %vm282, %v670, %v621
    %v688 = vsel %vm282, %v674, %v625
    %v689 = vsel %vm282, %v678, %v629
    %v690 = vsel %vm282, %v682, %v633
    %s691 = sld [smem:[#allocation3 + $0x4]]
    %s692 = smul.u32 %s691, 4
    %s693 = scalar_lea.vmem %s1, %s692
    %v694 = vld [vmem:[%s693] sm:$0xf]
    %v697 = vunpack.c.l.s4 1966171168
    %v698 = vunpack.c.0.s8 %v697
    %v699 = vlaneseq
    %v700 = vshrl.u32 %v699, 7
    %v701 = vsub.s32 %v698, %v700
    %v702 = vrot.slane %v694, %v701
    %v703 = vcombine.high %v702, %v702
    %v705 = vunpack.c.l.s4 1966171168
    %v706 = vunpack.c.0.s8 %v705
    %v707 = vlaneseq
    %v708 = vshrl.u32 %v707, 7
    %v709 = vsub.s32 %v706, %v708
    %v710 = vrot.slane %v702, %v709
    %v712 = vunpack.c.l.s4 1966171168
    %v713 = vunpack.c.0.s8 %v712
    %v714 = vlaneseq
    %v715 = vshrl.u32 %v714, 7
    %v716 = vsub.s32 %v713, %v715
    %v717 = vrot.slane %v703, %v716
    %v718 = vcombine.high %v710, %v710
    %v719 = vcombine.high %v717, %v717
    %v720 = vlaneseq
    %v721 = vshrl.u32 %v720, 7
    %v722 = vsub.s32 0, %v721
    %v723 = vrot.slane %v710, %v722
    %v724 = vlaneseq
    %v725 = vshrl.u32 %v724, 7
    %v726 = vsub.s32 0, %v725
    %v727 = vrot.slane %v717, %v726
    %v728 = vlaneseq
    %v729 = vshrl.u32 %v728, 7
    %v730 = vsub.s32 0, %v729
    %v731 = vrot.slane %v718, %v730
    %v732 = vlaneseq
    %v733 = vshrl.u32 %v732, 7
    %v734 = vsub.s32 0, %v733
    %v735 = vrot.slane %v719, %v734
    %s740 = sld [smem:[#allocation3 + $0x84]]
    %s741 = smul.u32 %s740, 4
    %s742 = scalar_lea.vmem %s1, %s741
    %v743 = vld [vmem:[%s742] sm:$0xf]
    %v746 = vunpack.c.l.s4 1966171168
    %v747 = vunpack.c.0.s8 %v746
    %v748 = vlaneseq
    %v749 = vshrl.u32 %v748, 7
    %v750 = vsub.s32 %v747, %v749
    %v751 = vrot.slane %v743, %v750
    %v752 = vcombine.high %v751, %v751
    %v754 = vunpack.c.l.s4 1966171168
    %v755 = vunpack.c.0.s8 %v754
    %v756 = vlaneseq
    %v757 = vshrl.u32 %v756, 7
    %v758 = vsub.s32 %v755, %v757
    %v759 = vrot.slane %v751, %v758
    %v761 = vunpack.c.l.s4 1966171168
    %v762 = vunpack.c.0.s8 %v761
    %v763 = vlaneseq
    %v764 = vshrl.u32 %v763, 7
    %v765 = vsub.s32 %v762, %v764
    %v766 = vrot.slane %v752, %v765
    %v767 = vcombine.high %v759, %v759
    %v768 = vcombine.high %v766, %v766
    %v769 = vlaneseq
    %v770 = vshrl.u32 %v769, 7
    %v771 = vsub.s32 0, %v770
    %v772 = vrot.slane %v759, %v771
    %v773 = vlaneseq
    %v774 = vshrl.u32 %v773, 7
    %v775 = vsub.s32 0, %v774
    %v776 = vrot.slane %v766, %v775
    %v777 = vlaneseq
    %v778 = vshrl.u32 %v777, 7
    %v779 = vsub.s32 0, %v778
    %v780 = vrot.slane %v767, %v779
    %v781 = vlaneseq
    %v782 = vshrl.u32 %v781, 7
    %v783 = vsub.s32 0, %v782
    %v784 = vrot.slane %v768, %v783
    %v789 = vsel %vm282, %v772, %v723
    %v790 = vsel %vm282, %v776, %v727
    %v791 = vsel %vm282, %v780, %v731
    %v792 = vsel %vm282, %v784, %v735
    %s793 = sld [smem:[#allocation3 + $0x5]]
    %s794 = smul.u32 %s793, 4
    %s795 = scalar_lea.vmem %s1, %s794
    %v796 = vld [vmem:[%s795] sm:$0xf]
    %v799 = vunpack.c.l.s4 1966171168
    %v800 = vunpack.c.0.s8 %v799
    %v801 = vlaneseq
    %v802 = vshrl.u32 %v801, 7
    %v803 = vsub.s32 %v800, %v802
    %v804 = vrot.slane %v796, %v803
    %v805 = vcombine.high %v804, %v804
    %v807 = vunpack.c.l.s4 1966171168
    %v808 = vunpack.c.0.s8 %v807
    %v809 = vlaneseq
    %v810 = vshrl.u32 %v809, 7
    %v811 = vsub.s32 %v808, %v810
    %v812 = vrot.slane %v804, %v811
    %v814 = vunpack.c.l.s4 1966171168
    %v815 = vunpack.c.0.s8 %v814
    %v816 = vlaneseq
    %v817 = vshrl.u32 %v816, 7
    %v818 = vsub.s32 %v815, %v817
    %v819 = vrot.slane %v805, %v818
    %v820 = vcombine.high %v812, %v812
    %v821 = vcombine.high %v819, %v819
    %v822 = vlaneseq
    %v823 = vshrl.u32 %v822, 7
    %v824 = vsub.s32 0, %v823
    %v825 = vrot.slane %v812, %v824
    %v826 = vlaneseq
    %v827 = vshrl.u32 %v826, 7
    %v828 = vsub.s32 0, %v827
    %v829 = vrot.slane %v819, %v828
    %v830 = vlaneseq
    %v831 = vshrl.u32 %v830, 7
    %v832 = vsub.s32 0, %v831
    %v833 = vrot.slane %v820, %v832
    %v834 = vlaneseq
    %v835 = vshrl.u32 %v834, 7
    %v836 = vsub.s32 0, %v835
    %v837 = vrot.slane %v821, %v836
    %s842 = sld [smem:[#allocation3 + $0x85]]
    %s843 = smul.u32 %s842, 4
    %s844 = scalar_lea.vmem %s1, %s843
    %v845 = vld [vmem:[%s844] sm:$0xf]
    %v848 = vunpack.c.l.s4 1966171168
    %v849 = vunpack.c.0.s8 %v848
    %v850 = vlaneseq
    %v851 = vshrl.u32 %v850, 7
    %v852 = vsub.s32 %v849, %v851
    %v853 = vrot.slane %v845, %v852
    %v854 = vcombine.high %v853, %v853
    %v856 = vunpack.c.l.s4 1966171168
    %v857 = vunpack.c.0.s8 %v856
    %v858 = vlaneseq
    %v859 = vshrl.u32 %v858, 7
    %v860 = vsub.s32 %v857, %v859
    %v861 = vrot.slane %v853, %v860
    %v863 = vunpack.c.l.s4 1966171168
    %v864 = vunpack.c.0.s8 %v863
    %v865 = vlaneseq
    %v866 = vshrl.u32 %v865, 7
    %v867 = vsub.s32 %v864, %v866
    %v868 = vrot.slane %v854, %v867
    %v869 = vcombine.high %v861, %v861
    %v870 = vcombine.high %v868, %v868
    %v871 = vlaneseq
    %v872 = vshrl.u32 %v871, 7
    %v873 = vsub.s32 0, %v872
    %v874 = vrot.slane %v861, %v873
    %v875 = vlaneseq
    %v876 = vshrl.u32 %v875, 7
    %v877 = vsub.s32 0, %v876
    %v878 = vrot.slane %v868, %v877
    %v879 = vlaneseq
    %v880 = vshrl.u32 %v879, 7
    %v881 = vsub.s32 0, %v880
    %v882 = vrot.slane %v869, %v881
    %v883 = vlaneseq
    %v884 = vshrl.u32 %v883, 7
    %v885 = vsub.s32 0, %v884
    %v886 = vrot.slane %v870, %v885
    %v891 = vsel %vm282, %v874, %v825
    %v892 = vsel %vm282, %v878, %v829
    %v893 = vsel %vm282, %v882, %v833
    %v894 = vsel %vm282, %v886, %v837
    %s895 = sld [smem:[#allocation3 + $0x6]]
    %s896 = smul.u32 %s895, 4
    %s897 = scalar_lea.vmem %s1, %s896
    %v898 = vld [vmem:[%s897] sm:$0xf]
    %v901 = vunpack.c.l.s4 1966171168
    %v902 = vunpack.c.0.s8 %v901
    %v903 = vlaneseq
    %v904 = vshrl.u32 %v903, 7
    %v905 = vsub.s32 %v902, %v904
    %v906 = vrot.slane %v898, %v905
    %v907 = vcombine.high %v906, %v906
    %v909 = vunpack.c.l.s4 1966171168
    %v910 = vunpack.c.0.s8 %v909
    %v911 = vlaneseq
    %v912 = vshrl.u32 %v911, 7
    %v913 = vsub.s32 %v910, %v912
    %v914 = vrot.slane %v906, %v913
    %v916 = vunpack.c.l.s4 1966171168
    %v917 = vunpack.c.0.s8 %v916
    %v918 = vlaneseq
    %v919 = vshrl.u32 %v918, 7
    %v920 = vsub.s32 %v917, %v919
    %v921 = vrot.slane %v907, %v920
    %v922 = vcombine.high %v914, %v914
    %v923 = vcombine.high %v921, %v921
    %v924 = vlaneseq
    %v925 = vshrl.u32 %v924, 7
    %v926 = vsub.s32 0, %v925
    %v927 = vrot.slane %v914, %v926
    %v928 = vlaneseq
    %v929 = vshrl.u32 %v928, 7
    %v930 = vsub.s32 0, %v929
    %v931 = vrot.slane %v921, %v930
    %v932 = vlaneseq
    %v933 = vshrl.u32 %v932, 7
    %v934 = vsub.s32 0, %v933
    %v935 = vrot.slane %v922, %v934
    %v936 = vlaneseq
    %v937 = vshrl.u32 %v936, 7
    %v938 = vsub.s32 0, %v937
    %v939 = vrot.slane %v923, %v938
    %s944 = sld [smem:[#allocation3 + $0x86]]
    %s945 = smul.u32 %s944, 4
    %s946 = scalar_lea.vmem %s1, %s945
    %v947 = vld [vmem:[%s946] sm:$0xf]
    %v950 = vunpack.c.l.s4 1966171168
    %v951 = vunpack.c.0.s8 %v950
    %v952 = vlaneseq
    %v953 = vshrl.u32 %v952, 7
    %v954 = vsub.s32 %v951, %v953
    %v955 = vrot.slane %v947, %v954
    %v956 = vcombine.high %v955, %v955
    %v958 = vunpack.c.l.s4 1966171168
    %v959 = vunpack.c.0.s8 %v958
    %v960 = vlaneseq
    %v961 = vshrl.u32 %v960, 7
    %v962 = vsub.s32 %v959, %v961
    %v963 = vrot.slane %v955, %v962
    %v965 = vunpack.c.l.s4 1966171168
    %v966 = vunpack.c.0.s8 %v965
    %v967 = vlaneseq
    %v968 = vshrl.u32 %v967, 7
    %v969 = vsub.s32 %v966, %v968
    %v970 = vrot.slane %v956, %v969
    %v971 = vcombine.high %v963, %v963
    %v972 = vcombine.high %v970, %v970
    %v973 = vlaneseq
    %v974 = vshrl.u32 %v973, 7
    %v975 = vsub.s32 0, %v974
    %v976 = vrot.slane %v963, %v975
    %v977 = vlaneseq
    %v978 = vshrl.u32 %v977, 7
    %v979 = vsub.s32 0, %v978
    %v980 = vrot.slane %v970, %v979
    %v981 = vlaneseq
    %v982 = vshrl.u32 %v981, 7
    %v983 = vsub.s32 0, %v982
    %v984 = vrot.slane %v971, %v983
    %v985 = vlaneseq
    %v986 = vshrl.u32 %v985, 7
    %v987 = vsub.s32 0, %v986
    %v988 = vrot.slane %v972, %v987
    %v993 = vsel %vm282, %v976, %v927
    %v994 = vsel %vm282, %v980, %v931
    %v995 = vsel %vm282, %v984, %v935
    %v996 = vsel %vm282, %v988, %v939
    %s997 = sld [smem:[#allocation3 + $0x7]]
    %s998 = smul.u32 %s997, 4
    %s999 = scalar_lea.vmem %s1, %s998
    %v1000 = vld [vmem:[%s999] sm:$0xf]
    %v1003 = vunpack.c.l.s4 1966171168
    %v1004 = vunpack.c.0.s8 %v1003
    %v1005 = vlaneseq
    %v1006 = vshrl.u32 %v1005, 7
    %v1007 = vsub.s32 %v1004, %v1006
    %v1008 = vrot.slane %v1000, %v1007
    %v1009 = vcombine.high %v1008, %v1008
    %v1011 = vunpack.c.l.s4 1966171168
    %v1012 = vunpack.c.0.s8 %v1011
    %v1013 = vlaneseq
    %v1014 = vshrl.u32 %v1013, 7
    %v1015 = vsub.s32 %v1012, %v1014
    %v1016 = vrot.slane %v1008, %v1015
    %v1018 = vunpack.c.l.s4 1966171168
    %v1019 = vunpack.c.0.s8 %v1018
    %v1020 = vlaneseq
    %v1021 = vshrl.u32 %v1020, 7
    %v1022 = vsub.s32 %v1019, %v1021
    %v1023 = vrot.slane %v1009, %v1022
    %v1024 = vcombine.high %v1016, %v1016
    %v1025 = vcombine.high %v1023, %v1023
    %v1026 = vlaneseq
    %v1027 = vshrl.u32 %v1026, 7
    %v1028 = vsub.s32 0, %v1027
    %v1029 = vrot.slane %v1016, %v1028
    %v1030 = vlaneseq
    %v1031 = vshrl.u32 %v1030, 7
    %v1032 = vsub.s32 0, %v1031
    %v1033 = vrot.slane %v1023, %v1032
    %v1034 = vlaneseq
    %v1035 = vshrl.u32 %v1034, 7
    %v1036 = vsub.s32 0, %v1035
    %v1037 = vrot.slane %v1024, %v1036
    %v1038 = vlaneseq
    %v1039 = vshrl.u32 %v1038, 7
    %v1040 = vsub.s32 0, %v1039
    %v1041 = vrot.slane %v1025, %v1040
    %s1046 = sld [smem:[#allocation3 + $0x87]]
    %s1047 = smul.u32 %s1046, 4
    %s1048 = scalar_lea.vmem %s1, %s1047
    %v1049 = vld [vmem:[%s1048] sm:$0xf]
    %v1052 = vunpack.c.l.s4 1966171168
    %v1053 = vunpack.c.0.s8 %v1052
    %v1054 = vlaneseq
    %v1055 = vshrl.u32 %v1054, 7
    %v1056 = vsub.s32 %v1053, %v1055
    %v1057 = vrot.slane %v1049, %v1056
    %v1058 = vcombine.high %v1057, %v1057
    %v1060 = vunpack.c.l.s4 1966171168
    %v1061 = vunpack.c.0.s8 %v1060
    %v1062 = vlaneseq
    %v1063 = vshrl.u32 %v1062, 7
    %v1064 = vsub.s32 %v1061, %v1063
    %v1065 = vrot.slane %v1057, %v1064
    %v1067 = vunpack.c.l.s4 1966171168
    %v1068 = vunpack.c.0.s8 %v1067
    %v1069 = vlaneseq
    %v1070 = vshrl.u32 %v1069, 7
    %v1071 = vsub.s32 %v1068, %v1070
    %v1072 = vrot.slane %v1058, %v1071
    %v1073 = vcombine.high %v1065, %v1065
    %v1074 = vcombine.high %v1072, %v1072
    %v1075 = vlaneseq
    %v1076 = vshrl.u32 %v1075, 7
    %v1077 = vsub.s32 0, %v1076
    %v1078 = vrot.slane %v1065, %v1077
    %v1079 = vlaneseq
    %v1080 = vshrl.u32 %v1079, 7
    %v1081 = vsub.s32 0, %v1080
    %v1082 = vrot.slane %v1072, %v1081
    %v1083 = vlaneseq
    %v1084 = vshrl.u32 %v1083, 7
    %v1085 = vsub.s32 0, %v1084
    %v1086 = vrot.slane %v1073, %v1085
    %v1087 = vlaneseq
    %v1088 = vshrl.u32 %v1087, 7
    %v1089 = vsub.s32 0, %v1088
    %v1090 = vrot.slane %v1074, %v1089
    %v1095 = vsel %vm282, %v1078, %v1029
    %v1096 = vsel %vm282, %v1082, %v1033
    %v1097 = vsel %vm282, %v1086, %v1037
    %v1098 = vsel %vm282, %v1090, %v1041
    %v1099 = vmul.f32 %v83, 0.0
    %v1100 = vmul.f32 %v87, 0.0
    %v1101 = vmul.f32 %v91, 0.0
    %v1102 = vmul.f32 %v95, 0.0
    %v1103 = vmul.f32 %v128, 0.0
    %v1104 = vmul.f32 %v132, 0.0
    %v1105 = vmul.f32 %v136, 0.0
    %v1106 = vmul.f32 %v140, 0.0
    %v1107 = vmul.f32 %v173, 0.0
    %v1108 = vmul.f32 %v177, 0.0
    %v1109 = vmul.f32 %v181, 0.0
    %v1110 = vmul.f32 %v185, 0.0
    %v1111 = vmul.f32 %v218, 0.0
    %v1112 = vmul.f32 %v222, 0.0
    %v1113 = vmul.f32 %v226, 0.0
    %v1114 = vmul.f32 %v230, 0.0
    %v1115 = vmul.f32 %v263, 0.0
    %v1116 = vmul.f32 %v267, 0.0
    %v1117 = vmul.f32 %v271, 0.0
    %v1118 = vmul.f32 %v275, 0.0
    %v1119 = vadd.f32 %v1099, %v1103
    %v1120 = vadd.f32 %v1100, %v1104
    %v1121 = vadd.f32 %v1101, %v1105
    %v1122 = vadd.f32 %v1102, %v1106
    %v1123 = vadd.f32 %v1107, %v1111
    %v1124 = vadd.f32 %v1108, %v1112
    %v1125 = vadd.f32 %v1109, %v1113
    %v1126 = vadd.f32 %v1110, %v1114
    %v1127 = vadd.f32 %v1115, %v381
    %v1128 = vadd.f32 %v1116, %v382
    %v1129 = vadd.f32 %v1117, %v383
    %v1130 = vadd.f32 %v1118, %v384
    %v1131 = vadd.f32 %v1119, %v1123
    %v1132 = vadd.f32 %v1120, %v1124
    %v1133 = vadd.f32 %v1121, %v1125
    %v1134 = vadd.f32 %v1122, %v1126
    %v1135 = vadd.f32 %v1131, %v1127
    %v1136 = vadd.f32 %v1132, %v1128
    %v1137 = vadd.f32 %v1133, %v1129
    %v1138 = vadd.f32 %v1134, %v1130
    %v1139 = vxor.u32 %v1135, 2147483648
    %v1140 = vmul.f32 %v1139, 1.442695
    %v1141 = vpow.pop %v1140
    %v1142 = vadd.f32 %v1141, 1.0
    %v1143 = vrcp.pop %v1142
    %v1144 = vmul.f32 1.0, %v1143
    %v1145 = vxor.u32 %v1136, 2147483648
    %v1146 = vmul.f32 %v1145, 1.442695
    %v1147 = vpow.pop %v1146
    %v1148 = vadd.f32 %v1147, 1.0
    %v1149 = vrcp.pop %v1148
    %v1150 = vmul.f32 1.0, %v1149
    %v1151 = vtanh.pop %v1137
    %v1152 = vxor.u32 %v1138, 2147483648
    %v1153 = vmul.f32 %v1152, 1.442695
    %v1154 = vpow.pop %v1153
    %v1155 = vadd.f32 %v1154, 1.0
    %v1156 = vrcp.pop %v1155
    %v1157 = vmul.f32 1.0, %v1156
    %v1158 = vmul.f32 %v1150, 0.0
    %v1159 = vmul.f32 %v1144, %v1151
    %v1160 = vadd.f32 %v1158, %v1159
    %v1161 = vtanh.pop %v1160
    %v1162 = vmul.f32 %v1157, %v1161
    %1164 = vset.pattern.permute.xlu0 0
    %1165 = vperm.xlu0 %1164, %v1162
    %v1166 = vpop.permute.xlu0 %1165
    %v1168 = vmul.f32 %v1166, %v83
    %v1169 = vmul.f32 %v1166, %v87
    %v1170 = vmul.f32 %v1166, %v91
    %v1171 = vmul.f32 %v1166, %v95
    %1172 = vset.pattern.permute.xlu0 1
    %1173 = vperm.xlu0 %1172, %v1162
    %v1174 = vpop.permute.xlu0 %1173
    %v1176 = vmul.f32 %v1174, %v128
    %v1177 = vmul.f32 %v1174, %v132
    %v1178 = vmul.f32 %v1174, %v136
    %v1179 = vmul.f32 %v1174, %v140
    %1180 = vset.pattern.permute.xlu0 2
    %1181 = vperm.xlu0 %1180, %v1162
    %v1182 = vpop.permute.xlu0 %1181
    %v1184 = vmul.f32 %v1182, %v173
    %v1185 = vmul.f32 %v1182, %v177
    %v1186 = vmul.f32 %v1182, %v181
    %v1187 = vmul.f32 %v1182, %v185
    %1188 = vset.pattern.permute.xlu0 3
    %1189 = vperm.xlu0 %1188, %v1162
    %v1190 = vpop.permute.xlu0 %1189
    %v1192 = vmul.f32 %v1190, %v218
    %v1193 = vmul.f32 %v1190, %v222
    %v1194 = vmul.f32 %v1190, %v226
    %v1195 = vmul.f32 %v1190, %v230
    %1196 = vset.pattern.permute.xlu0 4
    %1197 = vperm.xlu0 %1196, %v1162
    %v1198 = vpop.permute.xlu0 %1197
    %v1200 = vmul.f32 %v1198, %v263
    %v1201 = vmul.f32 %v1198, %v267
    %v1202 = vmul.f32 %v1198, %v271
    %v1203 = vmul.f32 %v1198, %v275
    %v1204 = vadd.f32 %v1168, %v1176
    %v1205 = vadd.f32 %v1169, %v1177
    %v1206 = vadd.f32 %v1170, %v1178
    %v1207 = vadd.f32 %v1171, %v1179
    %v1208 = vadd.f32 %v1184, %v1192
    %v1209 = vadd.f32 %v1185, %v1193
    %v1210 = vadd.f32 %v1186, %v1194
    %v1211 = vadd.f32 %v1187, %v1195
    %v1212 = vadd.f32 %v1200, %v483
    %v1213 = vadd.f32 %v1201, %v484
    %v1214 = vadd.f32 %v1202, %v485
    %v1215 = vadd.f32 %v1203, %v486
    %v1216 = vadd.f32 %v1204, %v1208
    %v1217 = vadd.f32 %v1205, %v1209
    %v1218 = vadd.f32 %v1206, %v1210
    %v1219 = vadd.f32 %v1207, %v1211
    %v1220 = vadd.f32 %v1216, %v1212
    %v1221 = vadd.f32 %v1217, %v1213
    %v1222 = vadd.f32 %v1218, %v1214
    %v1223 = vadd.f32 %v1219, %v1215
    %v1224 = vxor.u32 %v1220, 2147483648
    %v1225 = vmul.f32 %v1224, 1.442695
    %v1226 = vpow.pop %v1225
    %v1227 = vadd.f32 %v1226, 1.0
    %v1228 = vrcp.pop %v1227
    %v1229 = vmul.f32 1.0, %v1228
    %v1230 = vxor.u32 %v1221, 2147483648
    %v1231 = vmul.f32 %v1230, 1.442695
    %v1232 = vpow.pop %v1231
    %v1233 = vadd.f32 %v1232, 1.0
    %v1234 = vrcp.pop %v1233
    %v1235 = vmul.f32 1.0, %v1234
    %v1236 = vtanh.pop %v1222
    %v1237 = vxor.u32 %v1223, 2147483648
    %v1238 = vmul.f32 %v1237, 1.442695
    %v1239 = vpow.pop %v1238
    %v1240 = vadd.f32 %v1239, 1.0
    %v1241 = vrcp.pop %v1240
    %v1242 = vmul.f32 1.0, %v1241
    %v1243 = vmul.f32 %v1235, %v1160
    %v1244 = vmul.f32 %v1229, %v1236
    %v1245 = vadd.f32 %v1243, %v1244
    %v1246 = vtanh.pop %v1245
    %v1247 = vmul.f32 %v1242, %v1246
    %1249 = vset.pattern.permute.xlu0 0
    %1250 = vperm.xlu0 %1249, %v1247
    %v1251 = vpop.permute.xlu0 %1250
    %v1253 = vmul.f32 %v1251, %v83
    %v1254 = vmul.f32 %v1251, %v87
    %v1255 = vmul.f32 %v1251, %v91
    %v1256 = vmul.f32 %v1251, %v95
    %1257 = vset.pattern.permute.xlu0 1
    %1258 = vperm.xlu0 %1257, %v1247
    %v1259 = vpop.permute.xlu0 %1258
    %v1261 = vmul.f32 %v1259, %v128
    %v1262 = vmul.f32 %v1259, %v132
    %v1263 = vmul.f32 %v1259, %v136
    %v1264 = vmul.f32 %v1259, %v140
    %1265 = vset.pattern.permute.xlu0 2
    %1266 = vperm.xlu0 %1265, %v1247
    %v1267 = vpop.permute.xlu0 %1266
    %v1269 = vmul.f32 %v1267, %v173
    %v1270 = vmul.f32 %v1267, %v177
    %v1271 = vmul.f32 %v1267, %v181
    %v1272 = vmul.f32 %v1267, %v185
    %1273 = vset.pattern.permute.xlu0 3
    %1274 = vperm.xlu0 %1273, %v1247
    %v1275 = vpop.permute.xlu0 %1274
    %v1277 = vmul.f32 %v1275, %v218
    %v1278 = vmul.f32 %v1275, %v222
    %v1279 = vmul.f32 %v1275, %v226
    %v1280 = vmul.f32 %v1275, %v230
    %1281 = vset.pattern.permute.xlu0 4
    %1282 = vperm.xlu0 %1281, %v1247
    %v1283 = vpop.permute.xlu0 %1282
    %v1285 = vmul.f32 %v1283, %v263
    %v1286 = vmul.f32 %v1283, %v267
    %v1287 = vmul.f32 %v1283, %v271
    %v1288 = vmul.f32 %v1283, %v275
    %v1289 = vadd.f32 %v1253, %v1261
    %v1290 = vadd.f32 %v1254, %v1262
    %v1291 = vadd.f32 %v1255, %v1263
    %v1292 = vadd.f32 %v1256, %v1264
    %v1293 = vadd.f32 %v1269, %v1277
    %v1294 = vadd.f32 %v1270, %v1278
    %v1295 = vadd.f32 %v1271, %v1279
    %v1296 = vadd.f32 %v1272, %v1280
    %v1297 = vadd.f32 %v1285, %v585
    %v1298 = vadd.f32 %v1286, %v586
    %v1299 = vadd.f32 %v1287, %v587
    %v1300 = vadd.f32 %v1288, %v588
    %v1301 = vadd.f32 %v1289, %v1293
    %v1302 = vadd.f32 %v1290, %v1294
    %v1303 = vadd.f32 %v1291, %v1295
    %v1304 = vadd.f32 %v1292, %v1296
    %v1305 = vadd.f32 %v1301, %v1297
    %v1306 = vadd.f32 %v1302, %v1298
    %v1307 = vadd.f32 %v1303, %v1299
    %v1308 = vadd.f32 %v1304, %v1300
    %v1309 = vxor.u32 %v1305, 2147483648
    %v1310 = vmul.f32 %v1309, 1.442695
    %v1311 = vpow.pop %v1310
    %v1312 = vadd.f32 %v1311, 1.0
    %v1313 = vrcp.pop %v1312
    %v1314 = vmul.f32 1.0, %v1313
    %v1315 = vxor.u32 %v1306, 2147483648
    %v1316 = vmul.f32 %v1315, 1.442695
    %v1317 = vpow.pop %v1316
    %v1318 = vadd.f32 %v1317, 1.0
    %v1319 = vrcp.pop %v1318
    %v1320 = vmul.f32 1.0, %v1319
    %v1321 = vtanh.pop %v1307
    %v1322 = vxor.u32 %v1308, 2147483648
    %v1323 = vmul.f32 %v1322, 1.442695
    %v1324 = vpow.pop %v1323
    %v1325 = vadd.f32 %v1324, 1.0
    %v1326 = vrcp.pop %v1325
    %v1327 = vmul.f32 1.0, %v1326
    %v1328 = vmul.f32 %v1320, %v1245
    %v1329 = vmul.f32 %v1314, %v1321
    %v1330 = vadd.f32 %v1328, %v1329
    %v1331 = vtanh.pop %v1330
    %v1332 = vmul.f32 %v1327, %v1331
    %1334 = vset.pattern.permute.xlu0 0
    %1335 = vperm.xlu0 %1334, %v1332
    %v1336 = vpop.permute.xlu0 %1335
    %v1338 = vmul.f32 %v1336, %v83
    %v1339 = vmul.f32 %v1336, %v87
    %v1340 = vmul.f32 %v1336, %v91
    %v1341 = vmul.f32 %v1336, %v95
    %1342 = vset.pattern.permute.xlu0 1
    %1343 = vperm.xlu0 %1342, %v1332
    %v1344 = vpop.permute.xlu0 %1343
    %v1346 = vmul.f32 %v1344, %v128
    %v1347 = vmul.f32 %v1344, %v132
    %v1348 = vmul.f32 %v1344, %v136
    %v1349 = vmul.f32 %v1344, %v140
    %1350 = vset.pattern.permute.xlu0 2
    %1351 = vperm.xlu0 %1350, %v1332
    %v1352 = vpop.permute.xlu0 %1351
    %v1354 = vmul.f32 %v1352, %v173
    %v1355 = vmul.f32 %v1352, %v177
    %v1356 = vmul.f32 %v1352, %v181
    %v1357 = vmul.f32 %v1352, %v185
    %1358 = vset.pattern.permute.xlu0 3
    %1359 = vperm.xlu0 %1358, %v1332
    %v1360 = vpop.permute.xlu0 %1359
    %v1362 = vmul.f32 %v1360, %v218
    %v1363 = vmul.f32 %v1360, %v222
    %v1364 = vmul.f32 %v1360, %v226
    %v1365 = vmul.f32 %v1360, %v230
    %1366 = vset.pattern.permute.xlu0 4
    %1367 = vperm.xlu0 %1366, %v1332
    %v1368 = vpop.permute.xlu0 %1367
    %v1370 = vmul.f32 %v1368, %v263
    %v1371 = vmul.f32 %v1368, %v267
    %v1372 = vmul.f32 %v1368, %v271
    %v1373 = vmul.f32 %v1368, %v275
    %v1374 = vadd.f32 %v1338, %v1346
    %v1375 = vadd.f32 %v1339, %v1347
    %v1376 = vadd.f32 %v1340, %v1348
    %v1377 = vadd.f32 %v1341, %v1349
    %v1378 = vadd.f32 %v1354, %v1362
    %v1379 = vadd.f32 %v1355, %v1363
    %v1380 = vadd.f32 %v1356, %v1364
    %v1381 = vadd.f32 %v1357, %v1365
    %v1382 = vadd.f32 %v1370, %v687
    %v1383 = vadd.f32 %v1371, %v688
    %v1384 = vadd.f32 %v1372, %v689
    %v1385 = vadd.f32 %v1373, %v690
    %v1386 = vadd.f32 %v1374, %v1378
    %v1387 = vadd.f32 %v1375, %v1379
    %v1388 = vadd.f32 %v1376, %v1380
    %v1389 = vadd.f32 %v1377, %v1381
    %v1390 = vadd.f32 %v1386, %v1382
    %v1391 = vadd.f32 %v1387, %v1383
    %v1392 = vadd.f32 %v1388, %v1384
    %v1393 = vadd.f32 %v1389, %v1385
    %v1394 = vxor.u32 %v1390, 2147483648
    %v1395 = vmul.f32 %v1394, 1.442695
    %v1396 = vpow.pop %v1395
    %v1397 = vadd.f32 %v1396, 1.0
    %v1398 = vrcp.pop %v1397
    %v1399 = vmul.f32 1.0, %v1398
    %v1400 = vxor.u32 %v1391, 2147483648
    %v1401 = vmul.f32 %v1400, 1.442695
    %v1402 = vpow.pop %v1401
    %v1403 = vadd.f32 %v1402, 1.0
    %v1404 = vrcp.pop %v1403
    %v1405 = vmul.f32 1.0, %v1404
    %v1406 = vtanh.pop %v1392
    %v1407 = vxor.u32 %v1393, 2147483648
    %v1408 = vmul.f32 %v1407, 1.442695
    %v1409 = vpow.pop %v1408
    %v1410 = vadd.f32 %v1409, 1.0
    %v1411 = vrcp.pop %v1410
    %v1412 = vmul.f32 1.0, %v1411
    %v1413 = vmul.f32 %v1405, %v1330
    %v1414 = vmul.f32 %v1399, %v1406
    %v1415 = vadd.f32 %v1413, %v1414
    %v1416 = vtanh.pop %v1415
    %v1417 = vmul.f32 %v1412, %v1416
    %1419 = vset.pattern.permute.xlu0 0
    %1420 = vperm.xlu0 %1419, %v1417
    %v1421 = vpop.permute.xlu0 %1420
    %v1423 = vmul.f32 %v1421, %v83
    %v1424 = vmul.f32 %v1421, %v87
    %v1425 = vmul.f32 %v1421, %v91
    %v1426 = vmul.f32 %v1421, %v95
    %1427 = vset.pattern.permute.xlu0 1
    %1428 = vperm.xlu0 %1427, %v1417
    %v1429 = vpop.permute.xlu0 %1428
    %v1431 = vmul.f32 %v1429, %v128
    %v1432 = vmul.f32 %v1429, %v132
    %v1433 = vmul.f32 %v1429, %v136
    %v1434 = vmul.f32 %v1429, %v140
    %1435 = vset.pattern.permute.xlu0 2
    %1436 = vperm.xlu0 %1435, %v1417
    %v1437 = vpop.permute.xlu0 %1436
    %v1439 = vmul.f32 %v1437, %v173
    %v1440 = vmul.f32 %v1437, %v177
    %v1441 = vmul.f32 %v1437, %v181
    %v1442 = vmul.f32 %v1437, %v185
    %1443 = vset.pattern.permute.xlu0 3
    %1444 = vperm.xlu0 %1443, %v1417
    %v1445 = vpop.permute.xlu0 %1444
    %v1447 = vmul.f32 %v1445, %v218
    %v1448 = vmul.f32 %v1445, %v222
    %v1449 = vmul.f32 %v1445, %v226
    %v1450 = vmul.f32 %v1445, %v230
    %1451 = vset.pattern.permute.xlu0 4
    %1452 = vperm.xlu0 %1451, %v1417
    %v1453 = vpop.permute.xlu0 %1452
    %v1455 = vmul.f32 %v1453, %v263
    %v1456 = vmul.f32 %v1453, %v267
    %v1457 = vmul.f32 %v1453, %v271
    %v1458 = vmul.f32 %v1453, %v275
    %v1459 = vadd.f32 %v1423, %v1431
    %v1460 = vadd.f32 %v1424, %v1432
    %v1461 = vadd.f32 %v1425, %v1433
    %v1462 = vadd.f32 %v1426, %v1434
    %v1463 = vadd.f32 %v1439, %v1447
    %v1464 = vadd.f32 %v1440, %v1448
    %v1465 = vadd.f32 %v1441, %v1449
    %v1466 = vadd.f32 %v1442, %v1450
    %v1467 = vadd.f32 %v1455, %v789
    %v1468 = vadd.f32 %v1456, %v790
    %v1469 = vadd.f32 %v1457, %v791
    %v1470 = vadd.f32 %v1458, %v792
    %v1471 = vadd.f32 %v1459, %v1463
    %v1472 = vadd.f32 %v1460, %v1464
    %v1473 = vadd.f32 %v1461, %v1465
    %v1474 = vadd.f32 %v1462, %v1466
    %v1475 = vadd.f32 %v1471, %v1467
    %v1476 = vadd.f32 %v1472, %v1468
    %v1477 = vadd.f32 %v1473, %v1469
    %v1478 = vadd.f32 %v1474, %v1470
    %v1479 = vxor.u32 %v1475, 2147483648
    %v1480 = vmul.f32 %v1479, 1.442695
    %v1481 = vpow.pop %v1480
    %v1482 = vadd.f32 %v1481, 1.0
    %v1483 = vrcp.pop %v1482
    %v1484 = vmul.f32 1.0, %v1483
    %v1485 = vxor.u32 %v1476, 2147483648
    %v1486 = vmul.f32 %v1485, 1.442695
    %v1487 = vpow.pop %v1486
    %v1488 = vadd.f32 %v1487, 1.0
    %v1489 = vrcp.pop %v1488
    %v1490 = vmul.f32 1.0, %v1489
    %v1491 = vtanh.pop %v1477
    %v1492 = vxor.u32 %v1478, 2147483648
    %v1493 = vmul.f32 %v1492, 1.442695
    %v1494 = vpow.pop %v1493
    %v1495 = vadd.f32 %v1494, 1.0
    %v1496 = vrcp.pop %v1495
    %v1497 = vmul.f32 1.0, %v1496
    %v1498 = vmul.f32 %v1490, %v1415
    %v1499 = vmul.f32 %v1484, %v1491
    %v1500 = vadd.f32 %v1498, %v1499
    %v1501 = vtanh.pop %v1500
    %v1502 = vmul.f32 %v1497, %v1501
    %1504 = vset.pattern.permute.xlu0 0
    %1505 = vperm.xlu0 %1504, %v1502
    %v1506 = vpop.permute.xlu0 %1505
    %v1508 = vmul.f32 %v1506, %v83
    %v1509 = vmul.f32 %v1506, %v87
    %v1510 = vmul.f32 %v1506, %v91
    %v1511 = vmul.f32 %v1506, %v95
    %1512 = vset.pattern.permute.xlu0 1
    %1513 = vperm.xlu0 %1512, %v1502
    %v1514 = vpop.permute.xlu0 %1513
    %v1516 = vmul.f32 %v1514, %v128
    %v1517 = vmul.f32 %v1514, %v132
    %v1518 = vmul.f32 %v1514, %v136
    %v1519 = vmul.f32 %v1514, %v140
    %1520 = vset.pattern.permute.xlu0 2
    %1521 = vperm.xlu0 %1520, %v1502
    %v1522 = vpop.permute.xlu0 %1521
    %v1524 = vmul.f32 %v1522, %v173
    %v1525 = vmul.f32 %v1522, %v177
    %v1526 = vmul.f32 %v1522, %v181
    %v1527 = vmul.f32 %v1522, %v185
    %1528 = vset.pattern.permute.xlu0 3
    %1529 = vperm.xlu0 %1528, %v1502
    %v1530 = vpop.permute.xlu0 %1529
    %v1532 = vmul.f32 %v1530, %v218
    %v1533 = vmul.f32 %v1530, %v222
    %v1534 = vmul.f32 %v1530, %v226
    %v1535 = vmul.f32 %v1530, %v230
    %1536 = vset.pattern.permute.xlu0 4
    %1537 = vperm.xlu0 %1536, %v1502
    %v1538 = vpop.permute.xlu0 %1537
    %v1540 = vmul.f32 %v1538, %v263
    %v1541 = vmul.f32 %v1538, %v267
    %v1542 = vmul.f32 %v1538, %v271
    %v1543 = vmul.f32 %v1538, %v275
    %v1544 = vadd.f32 %v1508, %v1516
    %v1545 = vadd.f32 %v1509, %v1517
    %v1546 = vadd.f32 %v1510, %v1518
    %v1547 = vadd.f32 %v1511, %v1519
    %v1548 = vadd.f32 %v1524, %v1532
    %v1549 = vadd.f32 %v1525, %v1533
    %v1550 = vadd.f32 %v1526, %v1534
    %v1551 = vadd.f32 %v1527, %v1535
    %v1552 = vadd.f32 %v1540, %v891
    %v1553 = vadd.f32 %v1541, %v892
    %v1554 = vadd.f32 %v1542, %v893
    %v1555 = vadd.f32 %v1543, %v894
    %v1556 = vadd.f32 %v1544, %v1548
    %v1557 = vadd.f32 %v1545, %v1549
    %v1558 = vadd.f32 %v1546, %v1550
    %v1559 = vadd.f32 %v1547, %v1551
    %v1560 = vadd.f32 %v1556, %v1552
    %v1561 = vadd.f32 %v1557, %v1553
    %v1562 = vadd.f32 %v1558, %v1554
    %v1563 = vadd.f32 %v1559, %v1555
    %v1564 = vxor.u32 %v1560, 2147483648
    %v1565 = vmul.f32 %v1564, 1.442695
    %v1566 = vpow.pop %v1565
    %v1567 = vadd.f32 %v1566, 1.0
    %v1568 = vrcp.pop %v1567
    %v1569 = vmul.f32 1.0, %v1568
    %v1570 = vxor.u32 %v1561, 2147483648
    %v1571 = vmul.f32 %v1570, 1.442695
    %v1572 = vpow.pop %v1571
    %v1573 = vadd.f32 %v1572, 1.0
    %v1574 = vrcp.pop %v1573
    %v1575 = vmul.f32 1.0, %v1574
    %v1576 = vtanh.pop %v1562
    %v1577 = vxor.u32 %v1563, 2147483648
    %v1578 = vmul.f32 %v1577, 1.442695
    %v1579 = vpow.pop %v1578
    %v1580 = vadd.f32 %v1579, 1.0
    %v1581 = vrcp.pop %v1580
    %v1582 = vmul.f32 1.0, %v1581
    %v1583 = vmul.f32 %v1575, %v1500
    %v1584 = vmul.f32 %v1569, %v1576
    %v1585 = vadd.f32 %v1583, %v1584
    %v1586 = vtanh.pop %v1585
    %v1587 = vmul.f32 %v1582, %v1586
    %1589 = vset.pattern.permute.xlu0 0
    %1590 = vperm.xlu0 %1589, %v1587
    %v1591 = vpop.permute.xlu0 %1590
    %v1593 = vmul.f32 %v1591, %v83
    %v1594 = vmul.f32 %v1591, %v87
    %v1595 = vmul.f32 %v1591, %v91
    %v1596 = vmul.f32 %v1591, %v95
    %1597 = vset.pattern.permute.xlu0 1
    %1598 = vperm.xlu0 %1597, %v1587
    %v1599 = vpop.permute.xlu0 %1598
    %v1601 = vmul.f32 %v1599, %v128
    %v1602 = vmul.f32 %v1599, %v132
    %v1603 = vmul.f32 %v1599, %v136
    %v1604 = vmul.f32 %v1599, %v140
    %1605 = vset.pattern.permute.xlu0 2
    %1606 = vperm.xlu0 %1605, %v1587
    %v1607 = vpop.permute.xlu0 %1606
    %v1609 = vmul.f32 %v1607, %v173
    %v1610 = vmul.f32 %v1607, %v177
    %v1611 = vmul.f32 %v1607, %v181
    %v1612 = vmul.f32 %v1607, %v185
    %1613 = vset.pattern.permute.xlu0 3
    %1614 = vperm.xlu0 %1613, %v1587
    %v1615 = vpop.permute.xlu0 %1614
    %v1617 = vmul.f32 %v1615, %v218
    %v1618 = vmul.f32 %v1615, %v222
    %v1619 = vmul.f32 %v1615, %v226
    %v1620 = vmul.f32 %v1615, %v230
    %1621 = vset.pattern.permute.xlu0 4
    %1622 = vperm.xlu0 %1621, %v1587
    %v1623 = vpop.permute.xlu0 %1622
    %v1625 = vmul.f32 %v1623, %v263
    %v1626 = vmul.f32 %v1623, %v267
    %v1627 = vmul.f32 %v1623, %v271
    %v1628 = vmul.f32 %v1623, %v275
    %v1629 = vadd.f32 %v1593, %v1601
    %v1630 = vadd.f32 %v1594, %v1602
    %v1631 = vadd.f32 %v1595, %v1603
    %v1632 = vadd.f32 %v1596, %v1604
    %v1633 = vadd.f32 %v1609, %v1617
    %v1634 = vadd.f32 %v1610, %v1618
    %v1635 = vadd.f32 %v1611, %v1619
    %v1636 = vadd.f32 %v1612, %v1620
    %v1637 = vadd.f32 %v1625, %v993
    %v1638 = vadd.f32 %v1626, %v994
    %v1639 = vadd.f32 %v1627, %v995
    %v1640 = vadd.f32 %v1628, %v996
    %v1641 = vadd.f32 %v1629, %v1633
    %v1642 = vadd.f32 %v1630, %v1634
    %v1643 = vadd.f32 %v1631, %v1635
    %v1644 = vadd.f32 %v1632, %v1636
    %v1645 = vadd.f32 %v1641, %v1637
    %v1646 = vadd.f32 %v1642, %v1638
    %v1647 = vadd.f32 %v1643, %v1639
    %v1648 = vadd.f32 %v1644, %v1640
    %v1649 = vxor.u32 %v1645, 2147483648
    %v1650 = vmul.f32 %v1649, 1.442695
    %v1651 = vpow.pop %v1650
    %v1652 = vadd.f32 %v1651, 1.0
    %v1653 = vrcp.pop %v1652
    %v1654 = vmul.f32 1.0, %v1653
    %v1655 = vxor.u32 %v1646, 2147483648
    %v1656 = vmul.f32 %v1655, 1.442695
    %v1657 = vpow.pop %v1656
    %v1658 = vadd.f32 %v1657, 1.0
    %v1659 = vrcp.pop %v1658
    %v1660 = vmul.f32 1.0, %v1659
    %v1661 = vtanh.pop %v1647
    %v1662 = vxor.u32 %v1648, 2147483648
    %v1663 = vmul.f32 %v1662, 1.442695
    %v1664 = vpow.pop %v1663
    %v1665 = vadd.f32 %v1664, 1.0
    %v1666 = vrcp.pop %v1665
    %v1667 = vmul.f32 1.0, %v1666
    %v1668 = vmul.f32 %v1660, %v1585
    %v1669 = vmul.f32 %v1654, %v1661
    %v1670 = vadd.f32 %v1668, %v1669
    %v1671 = vtanh.pop %v1670
    %v1672 = vmul.f32 %v1667, %v1671
    %1674 = vset.pattern.permute.xlu0 0
    %1675 = vperm.xlu0 %1674, %v1672
    %v1676 = vpop.permute.xlu0 %1675
    %v1678 = vmul.f32 %v1676, %v83
    %v1679 = vmul.f32 %v1676, %v87
    %v1680 = vmul.f32 %v1676, %v91
    %v1681 = vmul.f32 %v1676, %v95
    %1682 = vset.pattern.permute.xlu0 1
    %1683 = vperm.xlu0 %1682, %v1672
    %v1684 = vpop.permute.xlu0 %1683
    %v1686 = vmul.f32 %v1684, %v128
    %v1687 = vmul.f32 %v1684, %v132
    %v1688 = vmul.f32 %v1684, %v136
    %v1689 = vmul.f32 %v1684, %v140
    %1690 = vset.pattern.permute.xlu0 2
    %1691 = vperm.xlu0 %1690, %v1672
    %v1692 = vpop.permute.xlu0 %1691
    %v1694 = vmul.f32 %v1692, %v173
    %v1695 = vmul.f32 %v1692, %v177
    %v1696 = vmul.f32 %v1692, %v181
    %v1697 = vmul.f32 %v1692, %v185
    %1698 = vset.pattern.permute.xlu0 3
    %1699 = vperm.xlu0 %1698, %v1672
    %v1700 = vpop.permute.xlu0 %1699
    %v1702 = vmul.f32 %v1700, %v218
    %v1703 = vmul.f32 %v1700, %v222
    %v1704 = vmul.f32 %v1700, %v226
    %v1705 = vmul.f32 %v1700, %v230
    %1706 = vset.pattern.permute.xlu0 4
    %1707 = vperm.xlu0 %1706, %v1672
    %v1708 = vpop.permute.xlu0 %1707
    %v1710 = vmul.f32 %v1708, %v263
    %v1711 = vmul.f32 %v1708, %v267
    %v1712 = vmul.f32 %v1708, %v271
    %v1713 = vmul.f32 %v1708, %v275
    %v1714 = vadd.f32 %v1678, %v1686
    %v1715 = vadd.f32 %v1679, %v1687
    %v1716 = vadd.f32 %v1680, %v1688
    %v1717 = vadd.f32 %v1681, %v1689
    %v1718 = vadd.f32 %v1694, %v1702
    %v1719 = vadd.f32 %v1695, %v1703
    %v1720 = vadd.f32 %v1696, %v1704
    %v1721 = vadd.f32 %v1697, %v1705
    %v1722 = vadd.f32 %v1710, %v1095
    %v1723 = vadd.f32 %v1711, %v1096
    %v1724 = vadd.f32 %v1712, %v1097
    %v1725 = vadd.f32 %v1713, %v1098
    %v1726 = vadd.f32 %v1714, %v1718
    %v1727 = vadd.f32 %v1715, %v1719
    %v1728 = vadd.f32 %v1716, %v1720
    %v1729 = vadd.f32 %v1717, %v1721
    %v1730 = vadd.f32 %v1726, %v1722
    %v1731 = vadd.f32 %v1727, %v1723
    %v1732 = vadd.f32 %v1728, %v1724
    %v1733 = vadd.f32 %v1729, %v1725
    %v1734 = vxor.u32 %v1730, 2147483648
    %v1735 = vmul.f32 %v1734, 1.442695
    %v1736 = vpow.pop %v1735
    %v1737 = vadd.f32 %v1736, 1.0
    %v1738 = vrcp.pop %v1737
    %v1739 = vmul.f32 1.0, %v1738
    %v1740 = vxor.u32 %v1731, 2147483648
    %v1741 = vmul.f32 %v1740, 1.442695
    %v1742 = vpow.pop %v1741
    %v1743 = vadd.f32 %v1742, 1.0
    %v1744 = vrcp.pop %v1743
    %v1745 = vmul.f32 1.0, %v1744
    %v1746 = vtanh.pop %v1732
    %v1747 = vxor.u32 %v1733, 2147483648
    %v1748 = vmul.f32 %v1747, 1.442695
    %v1749 = vpow.pop %v1748
    %v1750 = vadd.f32 %v1749, 1.0
    %v1751 = vrcp.pop %v1750
    %v1752 = vmul.f32 1.0, %v1751
    %v1753 = vmul.f32 %v1745, %v1670
    %v1754 = vmul.f32 %v1739, %v1746
    %v1755 = vadd.f32 %v1753, %v1754
    %v1756 = vtanh.pop %v1755
    %v1757 = vmul.f32 %v1752, %v1756
    %v1758 = vld [vmem:[%s3] sm:$0x1]
    %1760 = vset.pattern.permute.xlu0 0
    %1761 = vperm.xlu0 %1760, %v1757
    %v1762 = vpop.permute.xlu0 %1761
    %v1764 = vlaneseq
    %v1765 = vshrl.u32 %v1764, 7
    %v1766 = vsub.s32 0, %v1765
    %v1767 = vrot.slane %v1758, %v1766
    %v1768 = vmul.f32 %v1762, %v1767
    %v1769 = vld [vmem:[%s3 + $0x1] sm:$0x1]
    %1770 = vset.pattern.permute.xlu0 1
    %1771 = vperm.xlu0 %1770, %v1757
    %v1772 = vpop.permute.xlu0 %1771
    %v1774 = vlaneseq
    %v1775 = vshrl.u32 %v1774, 7
    %v1776 = vsub.s32 0, %v1775
    %v1777 = vrot.slane %v1769, %v1776
    %v1778 = vmul.f32 %v1772, %v1777
    %v1779 = vld [vmem:[%s3 + $0x2] sm:$0x1]
    %1780 = vset.pattern.permute.xlu0 2
    %1781 = vperm.xlu0 %1780, %v1757
    %v1782 = vpop.permute.xlu0 %1781
    %v1784 = vlaneseq
    %v1785 = vshrl.u32 %v1784, 7
    %v1786 = vsub.s32 0, %v1785
    %v1787 = vrot.slane %v1779, %v1786
    %v1788 = vmul.f32 %v1782, %v1787
    %v1789 = vld [vmem:[%s3 + $0x3] sm:$0x1]
    %1790 = vset.pattern.permute.xlu0 3
    %1791 = vperm.xlu0 %1790, %v1757
    %v1792 = vpop.permute.xlu0 %1791
    %v1794 = vlaneseq
    %v1795 = vshrl.u32 %v1794, 7
    %v1796 = vsub.s32 0, %v1795
    %v1797 = vrot.slane %v1789, %v1796
    %v1798 = vmul.f32 %v1792, %v1797
    %v1799 = vld [vmem:[%s3 + $0x4] sm:$0x1]
    %1800 = vset.pattern.permute.xlu0 4
    %1801 = vperm.xlu0 %1800, %v1757
    %v1802 = vpop.permute.xlu0 %1801
    %v1804 = vlaneseq
    %v1805 = vshrl.u32 %v1804, 7
    %v1806 = vsub.s32 0, %v1805
    %v1807 = vrot.slane %v1799, %v1806
    %v1808 = vmul.f32 %v1802, %v1807
    %v1809 = vadd.f32 %v1768, %v1778
    %v1810 = vadd.f32 %v1788, %v1798
    %v1811 = vadd.f32 %v1809, %v1810
    %v1812 = vadd.f32 %v1811, %v1808
    %v1813 = vld [vmem:[%s4] sm:$0x1]
    %v1815 = vlaneseq
    %v1816 = vshrl.u32 %v1815, 7
    %v1817 = vsub.s32 0, %v1816
    %v1818 = vrot.slane %v1813, %v1817
    %v1820 = vadd.f32 %v1812, %v1818
    %v1821 = vtanh.pop %v1820
    %v1822 = vld [vmem:[%s5] sm:$0xff]
    %v1823 = vld [vmem:[%s5 + $0x8] sm:$0x3]
    %v1824 = vld [vmem:[%s6] sm:$0x1]
    %v1826 = vlaneseq
    %v1827 = vshrl.u32 %v1826, 7
    %v1828 = vsub.s32 0, %v1827
    %v1829 = vrot.slane %v1824, %v1828
    %vm1831 = vcmask 80896
    %v1833 = vsel %vm1831, %v1821, 0
    %vm1835 = vcmask 1041408
    %v1837 = vsel %vm1835, %v1823, 0
    %1839 = vmatprep.subr.mxu0 0.0
    %1840 = vmatpush1.msra.mxu0 %v1822
    %1841 = vmatprep.subr.mxu0 0.0
    %1842 = vmatpush1.msra.mxu0 %v1837
    %1843 = vmatprep.subr.mxu0 0.0
    %1844 = vmatpush1.msra.mxu0 0.0
    %1845 = vmatprep.subr.mxu0 0.0
    %1846 = vmatpush1.msra.mxu0 0.0
    %1847 = vmatprep.subr.mxu0 0.0
    %1848 = vmatpush1.msra.mxu0 0.0
    %1849 = vmatprep.subr.mxu0 0.0
    %1850 = vmatpush1.msra.mxu0 0.0
    %1851 = vmatprep.subr.mxu0 0.0
    %1852 = vmatpush1.msra.mxu0 0.0
    %1853 = vmatprep.subr.mxu0 0.0
    %1854 = vmatpush1.msra.mxu0 0.0
    %1855 = vmatprep.subr.mxu0 0.0
    %1856 = vmatpush1.msra.mxu0 0.0
    %1857 = vmatprep.subr.mxu0 0.0
    %1858 = vmatpush1.msra.mxu0 0.0
    %1859 = vmatprep.subr.mxu0 0.0
    %1860 = vmatpush1.msra.mxu0 0.0
    %1861 = vmatprep.subr.mxu0 0.0
    %1862 = vmatpush1.msra.mxu0 0.0
    %1863 = vmatprep.subr.mxu0 0.0
    %1864 = vmatpush1.msra.mxu0 0.0
    %1865 = vmatprep.subr.mxu0 0.0
    %1866 = vmatpush1.msra.mxu0 0.0
    %1867 = vmatprep.subr.mxu0 0.0
    %1868 = vmatpush1.msra.mxu0 0.0
    %1869 = vmatprep.subr.mxu0 0.0
    %1870 = vmatpush1.msra.mxu0 0.0
    %1871 = vmatprep.subr.mxu0 0.0
    %1872 = vmatpush1.msra.mxu0 0.0
    %1873 = vmatprep.subr.mxu0 0.0
    %1874 = vmatpush1.msra.mxu0 0.0
    %1875 = vmatprep.subr.mxu0 0.0
    %1876 = vmatpush1.msra.mxu0 0.0
    %1877 = vmatprep.subr.mxu0 0.0
    %1878 = vmatpush1.msra.mxu0 0.0
    %1879 = vmatprep.subr.mxu0 0.0
    %1880 = vmatpush1.msra.mxu0 0.0
    %1881 = vmatprep.subr.mxu0 0.0
    %1882 = vmatpush1.msra.mxu0 0.0
    %1883 = vmatprep.subr.mxu0 0.0
    %1884 = vmatpush1.msra.mxu0 0.0
    %1885 = vmatprep.subr.mxu0 0.0
    %1886 = vmatpush1.msra.mxu0 0.0
    %1887 = vmatprep.subr.mxu0 0.0
    %1888 = vmatpush1.msra.mxu0 0.0
    %1889 = vmatprep.subr.mxu0 0.0
    %1890 = vmatpush1.msra.mxu0 0.0
    %1891 = vmatprep.subr.mxu0 0.0
    %1892 = vmatpush1.msra.mxu0 0.0
    %1893 = vmatprep.subr.mxu0 0.0
    %1894 = vmatpush1.msra.mxu0 0.0
    %1895 = vmatprep.subr.mxu0 0.0
    %1896 = vmatpush1.msra.mxu0 0.0
    %1897 = vmatprep.subr.mxu0 0.0
    %1898 = vmatpush1.msra.mxu0 0.0
    %1899 = vmatprep.subr.mxu0 0.0
    %1900 = vmatpush1.msra.mxu0 0.0
    %1901 = vmatprep.subr.mxu0 0.0
    %1902 = vmatpush1.msra.mxu0 0.0
    %1903 = vmatprep.mubr.f32.mxu0 0.0
    %1904 = vmatmul.mubr.f32.gmra.mrb[0].mxu0 %v1833
    %v1905 = vpop.f32.mrb[0].mxu0
    %v1906 = vadd.f32 %v1829, %v1905
    %v1907 = vpop.f32.mrb[0].mxu0
    %1908 = vdwg.mxu0
    %v1909 = vtanh.pop %v1906
    %v1910 = vld [vmem:[%s7] sm:$0x1]
    %v1912 = vlaneseq
    %v1913 = vshrl.u32 %v1912, 7
    %v1914 = vsub.s32 0, %v1913
    %v1915 = vrot.slane %v1910, %v1914
    %v1917 = vmul.f32 %v1909, %v1915
    %vm1918 = vcmask 517120
    %v1919 = vsel %vm1918, %v1917, 0.0
    %1920 = vadd.xlane.f32.xlu0 %v1919
    %v1921 = vpop.xlane.xlu0 %1920
    %v1922 = vld [vmem:[#allocation2] sm:$0x1]
    %v1924 = vlaneseq
    %v1925 = vshrl.u32 %v1924, 7
    %v1926 = vsub.s32 0, %v1925
    %v1927 = vrot.slane %v1922, %v1926
    %v1929 = vadd.f32 %v1921, %v1927
    %vm1930 = vcmask 1024
    %1931 = vst.msk [vmem:[%s9] sm:$0x3] %vm1930, %v1929
    %vm1932 = vcmask 33792
    %1933 = vst.msk [vmem:[#allocation6] sm:$0x3] %vm1932, %v1757
    // Predicated region
    $region42: #{constraint_threshold_forward.1} parent=1 // pred_check
      _
    $region43: #{constraint_threshold_forward.1} parent=1 // pred_check_branch
      %1935 = sbr.rel (0) target = $region45
    $region44: #{constraint_threshold_forward.1} parent=1 // pred_region
      _
    $region45: #{constraint_threshold_forward.1} parent=1 // pred_fallthru
      _
    // Predicated region
    $region46: #{constraint_threshold_forward.1} parent=1 // pred_check
      _
    $region47: #{constraint_threshold_forward.1} parent=1 // pred_check_branch
      %1937 = sbr.rel (0) target = $region49
    $region48: #{constraint_threshold_forward.1} parent=1 // pred_region
      %s1939 = ssub.s32 32, 32
      %1940 = vsyncadd [#allocation4], %s1939
      %s1942 = sshll.u32 [#allocation6], 4
      %s1943 = int_to_ptr.vmem [resolvable:$true] %s1942
      %1945 = dma.vmem_to_hbm [thread:$0]  %s1943, 32, %s10, [#allocation4]
    $region49: #{constraint_threshold_forward.1} parent=1 // pred_fallthru
      _
    // Predicated region
    $region50: #{constraint_threshold_forward.1} parent=1 // pred_check
      _
    $region51: #{constraint_threshold_forward.1} parent=1 // pred_check_branch
      %1947 = sbr.rel (0) target = $region53
    $region52: #{constraint_threshold_forward.1} parent=1 // pred_region
      _
    $region53: #{constraint_threshold_forward.1} parent=1 // pred_fallthru
      _
    // Predicated region
    $region54: #{constraint_threshold_forward.1} parent=1 // pred_check
      _
    $region55: #{constraint_threshold_forward.1} parent=1 // pred_check_branch
      %1949 = sbr.rel (0) target = $region57
    $region56: #{constraint_threshold_forward.1} parent=1 // pred_region
      %1950 = dma.done [#allocation4], 32
    $region57: #{constraint_threshold_forward.1} parent=1 // pred_fallthru
      _
    %1951 = vsyncpa [#allocation4], 1
    %1952 = vsyncpa [#allocation5], 1

</llo_original>
